<compile_context>
chip_gen: v5e
topology: v5e:2x2
jax: 0.10.0
libtpu: 0.0.40
codegen_flags: <defaults>
</compile_context>

<pallas_src>
import jax
import jax.numpy as jnp
import numpy as np
from jax.experimental import pallas as pl
from jax.experimental.pallas import tpu as pltpu


def _attn_kernel(xq_ref, xkv_ref, wq_ref, wk_ref, wv_ref, wo_ref, bo_ref,
                 mk_ref, mv_ref, o_ref,
                 xnq_ref, q_ref, m_ref, l_ref, acc_ref):
    h = pl.program_id(2)        # head index (reduction for to_out)
    ki = pl.program_id(3)       # kv-tile index (online-softmax reduction)
    n_kv = pl.num_programs(3)

    # ---- once per (batch, q-tile): RMSNorm of the q tile + output init ----
    @pl.when((h == 0) & (ki == 0))
    def _():
        xq = xq_ref[0].astype(jnp.float32)                          # (c, tq)
        inv = 1.0 / jnp.maximum(
            jnp.sqrt(jnp.sum(xq * xq, axis=0, keepdims=True)), 1e-12)
        xnq_ref[...] = xq * inv                                     # unit-norm x
        # bias-initialised output block (resident across h and ki)
        o_ref[0] = jnp.broadcast_to(bo_ref[...], o_ref.shape[1:]).astype(o_ref.dtype)

    # ---- once per head: q projection + mem_kv init of softmax stats ----
    @pl.when(ki == 0)
    def _():
        xnq = xnq_ref[...].astype(jnp.bfloat16)
        q_t = jnp.dot(wq_ref[0], xnq, preferred_element_type=jnp.float32)
        q_ref[...] = q_t.astype(q_ref.dtype)                        # (dh, tq) bf16
        # learned memory k/v: fold into the running stats (no concatenate)
        sim_m = jnp.dot(mk_ref[0], q_ref[...],
                        preferred_element_type=jnp.float32)         # (m, tq)
        m0 = jnp.max(sim_m, axis=0, keepdims=True)                  # (1, tq)
        p_m = jnp.exp(sim_m - m0)
        m_ref[...] = m0
        l_ref[...] = jnp.sum(p_m, axis=0, keepdims=True)
        acc_ref[...] = jnp.dot(mv_ref[0], p_m.astype(jnp.bfloat16),
                               preferred_element_type=jnp.float32)  # (dh, tq)

    # ---- every step: kv-tile RMSNorm + k/v projection + online softmax ----
    xkv = xkv_ref[0].astype(jnp.float32)                            # (c, tkv)
    inv = 1.0 / jnp.maximum(
        jnp.sqrt(jnp.sum(xkv * xkv, axis=0, keepdims=True)), 1e-12)
    xn = xkv * inv                                                  # (c, tkv)
    xn_b = xn.astype(jnp.bfloat16)

    v_t = jnp.dot(wv_ref[0], xn_b,
                  preferred_element_type=jnp.float32)               # (dh, tkv)
    k = jnp.dot(xn.T.astype(jnp.bfloat16), wk_ref[0],
                preferred_element_type=jnp.float32)                 # (tkv, dh)
    sim = jnp.dot(k.astype(jnp.bfloat16), q_ref[...],
                  preferred_element_type=jnp.float32)               # (tkv, tq)

    m_prev = m_ref[...]
    m_new = jnp.maximum(m_prev, jnp.max(sim, axis=0, keepdims=True))
    alpha = jnp.exp(m_prev - m_new)                                 # (1, tq)
    p = jnp.exp(sim - m_new)                                        # (tkv, tq)
    l_ref[...] = alpha * l_ref[...] + jnp.sum(p, axis=0, keepdims=True)
    acc_ref[...] = alpha * acc_ref[...] + jnp.dot(
        v_t.astype(jnp.bfloat16), p.astype(jnp.bfloat16),
        preferred_element_type=jnp.float32)                         # (dh, tq)
    m_ref[...] = m_new

    # ---- per-head finalize: fold this head's to_out slice into the output ----
    @pl.when(ki == n_kv - 1)
    def _():
        o_head = acc_ref[...] * pl.reciprocal(l_ref[...], approx=True)   # (dh, tq)
        o_ref[0] += jnp.dot(wo_ref[0], o_head.astype(jnp.bfloat16),
                            preferred_element_type=jnp.float32).astype(o_ref.dtype)


def attention_pallas(x, g, w_qkv, w_out, b_out, mem_kv, *, heads, dim_head,
                     q_block=512, kv_block=512):
    """x: (b, c, X, Y, Z) float32.  Returns (b, c, X, Y, Z), matching the PyTorch forward."""
    b, c, X, Y, Z = x.shape
    n = X * Y * Z
    dh = dim_head
    hidden = heads * dh
    m = mem_kv.shape[2]

    tq = min(q_block, n)
    tkv = min(kv_block, n)
    if n % tq != 0 or n % tkv != 0:
        raise ValueError(f"n={n} must be divisible by q_block={tq} and kv_block={tkv}")

    x_cn = x.reshape(b, c, n)                         # free reshape, no HBM transpose

    gscale = g.reshape(c).astype(jnp.float32) * (float(c) ** 0.5)
    scale = float(dh) ** -0.5

    # to_qkv weight (3*hidden, dim); q/k/v chunks, out-channel = head*dh + d.
    wq = w_qkv[:hidden].reshape(heads, dh, c)
    wk = w_qkv[hidden:2 * hidden].reshape(heads, dh, c)
    wv = w_qkv[2 * hidden:].reshape(heads, dh, c)

    # Fold RMSNorm's per-channel g*sqrt(c) into the input-channel axis of the
    # projections; fold the 1/sqrt(dh) attention scale into Wq.
    wq_t = (wq * gscale[None, None, :] * scale).astype(jnp.bfloat16)                 # (h, dh, c)
    wk_cd = (wk * gscale[None, None, :]).transpose(0, 2, 1).astype(jnp.bfloat16)     # (h, c, dh)
    wv_t = (wv * gscale[None, None, :]).astype(jnp.bfloat16)                         # (h, dh, c)

    # to_out weight (dim, hidden); per-head slice over the hidden axis.
    wo = w_out.reshape(c, heads, dh).transpose(1, 0, 2).astype(jnp.bfloat16)         # (h, c, dh)
    bo = b_out.reshape(c, 1).astype(jnp.float32)
    mk = mem_kv[0].astype(jnp.bfloat16)                                              # (h, m, dh)
    mv_t = mem_kv[1].transpose(0, 2, 1).astype(jnp.bfloat16)                         # (h, dh, m)

    grid = (b, n // tq, heads, n // tkv)

    out_cn = pl.pallas_call(
        _attn_kernel,
        out_shape=jax.ShapeDtypeStruct((b, c, n), x.dtype),
        grid_spec=pltpu.PrefetchScalarGridSpec(
            num_scalar_prefetch=0,
            grid=grid,
            in_specs=[
                pl.BlockSpec((1, c, tq), lambda i, qi, h, ki: (i, 0, qi)),    # x, q side
                pl.BlockSpec((1, c, tkv), lambda i, qi, h, ki: (i, 0, ki)),   # x, kv side
                pl.BlockSpec((1, dh, c), lambda i, qi, h, ki: (h, 0, 0)),     # Wq^T (scaled)
                pl.BlockSpec((1, c, dh), lambda i, qi, h, ki: (h, 0, 0)),     # Wk
                pl.BlockSpec((1, dh, c), lambda i, qi, h, ki: (h, 0, 0)),     # Wv^T
                pl.BlockSpec((1, c, dh), lambda i, qi, h, ki: (h, 0, 0)),     # to_out slice
                pl.BlockSpec((c, 1), lambda i, qi, h, ki: (0, 0)),            # to_out bias
                pl.BlockSpec((1, m, dh), lambda i, qi, h, ki: (h, 0, 0)),     # mem k
                pl.BlockSpec((1, dh, m), lambda i, qi, h, ki: (h, 0, 0)),     # mem v^T
            ],
            out_specs=pl.BlockSpec((1, c, tq), lambda i, qi, h, ki: (i, 0, qi)),
            scratch_shapes=[
                pltpu.VMEM((c, tq), jnp.float32),     # unit-normalised q-side x
                pltpu.VMEM((dh, tq), jnp.bfloat16),   # q^T (scale folded in)
                pltpu.VMEM((1, tq), jnp.float32),     # running max
                pltpu.VMEM((1, tq), jnp.float32),     # running denominator
                pltpu.VMEM((dh, tq), jnp.float32),    # running numerator
            ]),
        compiler_params=pltpu.CompilerParams(
            dimension_semantics=("parallel", "parallel", "arbitrary", "arbitrary"),
            vmem_limit_bytes=48 * 1024 * 1024),
    )(x_cn, x_cn, wq_t, wk_cd, wv_t, wo, bo, mk, mv_t)

    return out_cn.reshape(b, c, X, Y, Z)


def attention_reference(x, g, w_qkv, w_out, b_out, mem_kv, *, heads, dim_head):
    """Pure-JAX f32 reference matching the PyTorch forward."""
    b, c, X, Y, Z = x.shape
    n = X * Y * Z
    dh = dim_head
    hidden = heads * dh
    m = mem_kv.shape[2]

    norm = jnp.sqrt(jnp.sum(x * x, axis=1, keepdims=True))
    xn = x / jnp.maximum(norm, 1e-12) * g.reshape(1, c, 1, 1, 1) * (float(c) ** 0.5)

    xf = xn.reshape(b, c, n)
    qkv = jnp.einsum('oc,bcn->bon', w_qkv, xf)
    q, k, v = qkv[:, :hidden], qkv[:, hidden:2 * hidden], qkv[:, 2 * hidden:]

    def reh(t):
        return t.reshape(b, heads, dh, n).transpose(0, 1, 3, 2)   # (b, h, n, dh)

    q, k, v = reh(q), reh(k), reh(v)
    mk = jnp.broadcast_to(mem_kv[0][None], (b, heads, m, dh))
    mv = jnp.broadcast_to(mem_kv[1][None], (b, heads, m, dh))
    k = jnp.concatenate([mk, k], axis=2)
    v = jnp.concatenate([mv, v], axis=2)

    sim = jnp.einsum('bhid,bhjd->bhij', q, k) * (float(dh) ** -0.5)
    attn = jax.nn.softmax(sim, axis=-1)
    out = jnp.einsum('bhij,bhjd->bhid', attn, v)
    out = out.transpose(0, 1, 3, 2).reshape(b, hidden, X, Y, Z)
    out = jnp.einsum('oc,bcxyz->boxyz', w_out, out) + b_out.reshape(1, -1, 1, 1, 1)
    return out


if __name__ == "__main__":
    dim = 8          # channels
    heads = 4
    dim_head = 32
    num_mem_kv = 4
    batch = 2
    X = Y = Z = 8    # n = 512 tokens -> exercises q- and kv-tiling (256-blocks)
    hidden = heads * dim_head

    key = jax.random.PRNGKey(0)
    k1, k2, k3, k4, k5, k6 = jax.random.split(key, 6)

    x = jax.random.normal(k1, (batch, dim, X, Y, Z), dtype=jnp.float32)

    # Deterministic parameter init (synthetic; shapes match the nn.Module).
    g = 1.0 + 0.1 * jax.random.normal(k6, (dim,), jnp.float32)                # RMSNorm.g
    w_qkv = jax.random.normal(k2, (3 * hidden, dim), jnp.float32) * (1.0 / np.sqrt(dim))
    w_out = jax.random.normal(k3, (dim, hidden), jnp.float32) * (1.0 / np.sqrt(hidden))
    b_out = jax.random.normal(k4, (dim,), jnp.float32) * 0.01
    mem_kv = jax.random.normal(k5, (2, heads, num_mem_kv, dim_head), jnp.float32)

    out = attention_pallas(x, g, w_qkv, w_out, b_out, mem_kv,
                           heads=heads, dim_head=dim_head,
                           q_block=256, kv_block=256)
    out = jax.block_until_ready(out)

    ref = attention_reference(x, g, w_qkv, w_out, b_out, mem_kv,
                              heads=heads, dim_head=dim_head)
    ref = jax.block_until_ready(ref)

    # bf16 MXU operands + approx reciprocal => relaxed (but meaningful) tolerance.
    np.testing.assert_allclose(np.asarray(out), np.asarray(ref), rtol=3e-2, atol=3e-2)
    print("KERNEL_OK")
</pallas_src>

<mosaic_0001>
module attributes {stable_mosaic.version = 11 : i64} {
  func.func @_attn_kernel(%arg0: i32, %arg1: i32, %arg2: i32, %arg3: i32, %arg4: memref<1x8x256xf32, #tpu.memory_space<vmem>>, %arg5: memref<1x8x256xf32, #tpu.memory_space<vmem>>, %arg6: memref<1x32x8xbf16, #tpu.memory_space<vmem>>, %arg7: memref<1x8x32xbf16, #tpu.memory_space<vmem>>, %arg8: memref<1x32x8xbf16, #tpu.memory_space<vmem>>, %arg9: memref<1x8x32xbf16, #tpu.memory_space<vmem>>, %arg10: memref<8x1xf32, #tpu.memory_space<vmem>>, %arg11: memref<1x4x32xbf16, #tpu.memory_space<vmem>>, %arg12: memref<1x32x4xbf16, #tpu.memory_space<vmem>>, %arg13: memref<1x8x256xf32, #tpu.memory_space<vmem>>, %arg14: memref<8x256xf32, #tpu.memory_space<vmem>>, %arg15: memref<32x256xbf16, #tpu.memory_space<vmem>>, %arg16: memref<1x256xf32, #tpu.memory_space<vmem>>, %arg17: memref<1x256xf32, #tpu.memory_space<vmem>>, %arg18: memref<32x256xf32, #tpu.memory_space<vmem>>) attributes {dimension_semantics = [#tpu.dimension_semantics<parallel>, #tpu.dimension_semantics<parallel>, #tpu.dimension_semantics<arbitrary>, #tpu.dimension_semantics<arbitrary>], iteration_bounds = array<i64: 2, 2, 4, 2>, scalar_prefetch = 0 : i64, scratch_operands = 5 : i64, tpu.core_type = #tpu.core_type<tc>, window_params = [{transform_indices = @transform_0, window_bounds = array<i64: 1, 8, 256>}, {transform_indices = @transform_1, window_bounds = array<i64: 1, 8, 256>}, {transform_indices = @transform_2, window_bounds = array<i64: 1, 32, 8>}, {transform_indices = @transform_3, window_bounds = array<i64: 1, 8, 32>}, {transform_indices = @transform_4, window_bounds = array<i64: 1, 32, 8>}, {transform_indices = @transform_5, window_bounds = array<i64: 1, 8, 32>}, {pipeline_mode = #tpu.pipeline_mode<synchronous>, transform_indices = @transform_6, window_bounds = array<i64: 8, 1>}, {transform_indices = @transform_7, window_bounds = array<i64: 1, 4, 32>}, {transform_indices = @transform_8, window_bounds = array<i64: 1, 32, 4>}, {transform_indices = @transform_9, window_bounds = array<i64: 1, 8, 256>}]} {
    %c0_i32 = arith.constant 0 : i32
    %0 = arith.cmpi eq, %arg2, %c0_i32 : i32
    %c0_i32_0 = arith.constant 0 : i32
    %1 = arith.cmpi eq, %arg3, %c0_i32_0 : i32
    %2 = arith.andi %0, %1 : i1
    %3 = arith.extui %2 : i1 to i32
    %c0_i32_1 = arith.constant 0 : i32
    %4 = arith.cmpi ne, %3, %c0_i32_1 : i32
    scf.if %4 {
      %c0_35 = arith.constant 0 : index
      %c0_36 = arith.constant 0 : index
      %c0_37 = arith.constant 0 : index
      %59 = vector.load %arg4[%c0_35, %c0_36, %c0_37] : memref<1x8x256xf32, #tpu.memory_space<vmem>>, vector<1x8x256xf32>
      %60 = vector.shape_cast %59 : vector<1x8x256xf32> to vector<8x256xf32>
      %61 = arith.mulf %60, %60 : vector<8x256xf32>
      %cst_38 = arith.constant dense<0.000000e+00> : vector<256xf32>
      %62 = vector.multi_reduction <add>, %61, %cst_38 [0] : vector<8x256xf32> to vector<256xf32>
      %63 = vector.shape_cast %62 : vector<256xf32> to vector<1x256xf32>
      %64 = math.sqrt %63 : vector<1x256xf32>
      %cst_39 = arith.constant 9.99999996E-13 : f32
      %65 = vector.broadcast %cst_39 : f32 to vector<1x256xf32>
      %66 = arith.maximumf %64, %65 : vector<1x256xf32>
      %cst_40 = arith.constant 1.000000e+00 : f32
      %67 = vector.broadcast %cst_40 : f32 to vector<1x256xf32>
      %68 = arith.divf %67, %66 : vector<1x256xf32>
      %69 = vector.broadcast %68 : vector<1x256xf32> to vector<8x256xf32>
      %70 = arith.mulf %60, %69 : vector<8x256xf32>
      %c0_41 = arith.constant 0 : index
      %c0_42 = arith.constant 0 : index
      %71 = vector.load %arg14[%c0_41, %c0_42] : memref<8x256xf32, #tpu.memory_space<vmem>>, vector<8x256xf32>
      tpu.vector_store %arg14[%c0_41, %c0_42], %70 {strides = array<i32>} : memref<8x256xf32, #tpu.memory_space<vmem>>, vector<8x256xf32>,
      %c0_43 = arith.constant 0 : index
      %c0_44 = arith.constant 0 : index
      %72 = vector.load %arg10[%c0_43, %c0_44] : memref<8x1xf32, #tpu.memory_space<vmem>>, vector<8x1xf32>
      %73 = vector.shape_cast %72 : vector<8x1xf32> to vector<8x1xf32>
      %74 = vector.broadcast %73 : vector<8x1xf32> to vector<8x256xf32>
      %c0_45 = arith.constant 0 : index
      %c0_46 = arith.constant 0 : index
      %c0_47 = arith.constant 0 : index
      %75 = vector.load %arg13[%c0_45, %c0_46, %c0_47] : memref<1x8x256xf32, #tpu.memory_space<vmem>>, vector<1x8x256xf32>
      %76 = vector.shape_cast %75 : vector<1x8x256xf32> to vector<8x256xf32>
      %77 = vector.shape_cast %74 : vector<8x256xf32> to vector<1x8x256xf32>
      tpu.vector_store %arg13[%c0_45, %c0_46, %c0_47], %77 {strides = array<i32>} : memref<1x8x256xf32, #tpu.memory_space<vmem>>, vector<1x8x256xf32>,
    } else {
    }
    %c0_i32_2 = arith.constant 0 : i32
    %5 = arith.cmpi eq, %arg3, %c0_i32_2 : i32
    %6 = arith.extui %5 : i1 to i32
    %c0_i32_3 = arith.constant 0 : i32
    %7 = arith.cmpi ne, %6, %c0_i32_3 : i32
    scf.if %7 {
      %c0_35 = arith.constant 0 : index
      %c0_36 = arith.constant 0 : index
      %59 = vector.load %arg14[%c0_35, %c0_36] : memref<8x256xf32, #tpu.memory_space<vmem>>, vector<8x256xf32>
      %60 = arith.truncf %59 : vector<8x256xf32> to vector<8x256xbf16>
      %c0_37 = arith.constant 0 : index
      %c0_38 = arith.constant 0 : index
      %c0_39 = arith.constant 0 : index
      %61 = vector.load %arg6[%c0_37, %c0_38, %c0_39] : memref<1x32x8xbf16, #tpu.memory_space<vmem>>, vector<1x32x8xbf16>
      %62 = vector.shape_cast %61 : vector<1x32x8xbf16> to vector<32x8xbf16>
      %cst_40 = arith.constant dense<0.000000e+00> : vector<32x256xf32>
      %63 = tpu.matmul %62, %60, %cst_40 {dimension_numbers = #tpu.dot_dimension_numbers<[1], [0], [0], [1], [0, 0, 1, 1], [], []>} : vector<32x8xbf16>, vector<8x256xbf16>, vector<32x256xf32> -> vector<32x256xf32>
      %64 = arith.truncf %63 : vector<32x256xf32> to vector<32x256xbf16>
      %c0_41 = arith.constant 0 : index
      %c0_42 = arith.constant 0 : index
      %65 = vector.load %arg15[%c0_41, %c0_42] : memref<32x256xbf16, #tpu.memory_space<vmem>>, vector<32x256xbf16>
      tpu.vector_store %arg15[%c0_41, %c0_42], %64 {strides = array<i32>} : memref<32x256xbf16, #tpu.memory_space<vmem>>, vector<32x256xbf16>,
      %c0_43 = arith.constant 0 : index
      %c0_44 = arith.constant 0 : index
      %c0_45 = arith.constant 0 : index
      %66 = vector.load %arg11[%c0_43, %c0_44, %c0_45] : memref<1x4x32xbf16, #tpu.memory_space<vmem>>, vector<1x4x32xbf16>
      %67 = vector.shape_cast %66 : vector<1x4x32xbf16> to vector<4x32xbf16>
      %c0_46 = arith.constant 0 : index
      %c0_47 = arith.constant 0 : index
      %68 = vector.load %arg15[%c0_46, %c0_47] : memref<32x256xbf16, #tpu.memory_space<vmem>>, vector<32x256xbf16>
      %cst_48 = arith.constant dense<0.000000e+00> : vector<4x256xf32>
      %69 = tpu.matmul %67, %68, %cst_48 {dimension_numbers = #tpu.dot_dimension_numbers<[1], [0], [0], [1], [0, 0, 1, 1], [], []>} : vector<4x32xbf16>, vector<32x256xbf16>, vector<4x256xf32> -> vector<4x256xf32>
      %cst_49 = arith.constant dense<0xFF800000> : vector<256xf32>
      %70 = vector.multi_reduction <maximumf>, %69, %cst_49 [0] : vector<4x256xf32> to vector<256xf32>
      %71 = vector.shape_cast %70 : vector<256xf32> to vector<1x256xf32>
      %72 = vector.broadcast %71 : vector<1x256xf32> to vector<4x256xf32>
      %73 = arith.subf %69, %72 : vector<4x256xf32>
      %74 = math.exp %73 : vector<4x256xf32>
      %c0_50 = arith.constant 0 : index
      %c0_51 = arith.constant 0 : index
      %75 = vector.load %arg16[%c0_50, %c0_51] : memref<1x256xf32, #tpu.memory_space<vmem>>, vector<1x256xf32>
      tpu.vector_store %arg16[%c0_50, %c0_51], %71 {strides = array<i32>} : memref<1x256xf32, #tpu.memory_space<vmem>>, vector<1x256xf32>,
      %cst_52 = arith.constant dense<0.000000e+00> : vector<256xf32>
      %76 = vector.multi_reduction <add>, %74, %cst_52 [0] : vector<4x256xf32> to vector<256xf32>
      %77 = vector.shape_cast %76 : vector<256xf32> to vector<1x256xf32>
      %c0_53 = arith.constant 0 : index
      %c0_54 = arith.constant 0 : index
      %78 = vector.load %arg17[%c0_53, %c0_54] : memref<1x256xf32, #tpu.memory_space<vmem>>, vector<1x256xf32>
      tpu.vector_store %arg17[%c0_53, %c0_54], %77 {strides = array<i32>} : memref<1x256xf32, #tpu.memory_space<vmem>>, vector<1x256xf32>,
      %c0_55 = arith.constant 0 : index
      %c0_56 = arith.constant 0 : index
      %c0_57 = arith.constant 0 : index
      %79 = vector.load %arg12[%c0_55, %c0_56, %c0_57] : memref<1x32x4xbf16, #tpu.memory_space<vmem>>, vector<1x32x4xbf16>
      %80 = vector.shape_cast %79 : vector<1x32x4xbf16> to vector<32x4xbf16>
      %81 = arith.truncf %74 : vector<4x256xf32> to vector<4x256xbf16>
      %cst_58 = arith.constant dense<0.000000e+00> : vector<32x256xf32>
      %82 = tpu.matmul %80, %81, %cst_58 {dimension_numbers = #tpu.dot_dimension_numbers<[1], [0], [0], [1], [0, 0, 1, 1], [], []>} : vector<32x4xbf16>, vector<4x256xbf16>, vector<32x256xf32> -> vector<32x256xf32>
      %c0_59 = arith.constant 0 : index
      %c0_60 = arith.constant 0 : index
      %83 = vector.load %arg18[%c0_59, %c0_60] : memref<32x256xf32, #tpu.memory_space<vmem>>, vector<32x256xf32>
      tpu.vector_store %arg18[%c0_59, %c0_60], %82 {strides = array<i32>} : memref<32x256xf32, #tpu.memory_space<vmem>>, vector<32x256xf32>,
    } else {
    }
    %c0 = arith.constant 0 : index
    %c0_4 = arith.constant 0 : index
    %c0_5 = arith.constant 0 : index
    %8 = vector.load %arg5[%c0, %c0_4, %c0_5] : memref<1x8x256xf32, #tpu.memory_space<vmem>>, vector<1x8x256xf32>
    %9 = vector.shape_cast %8 : vector<1x8x256xf32> to vector<8x256xf32>
    %10 = arith.mulf %9, %9 : vector<8x256xf32>
    %cst = arith.constant dense<0.000000e+00> : vector<256xf32>
    %11 = vector.multi_reduction <add>, %10, %cst [0] : vector<8x256xf32> to vector<256xf32>
    %12 = vector.shape_cast %11 : vector<256xf32> to vector<1x256xf32>
    %13 = math.sqrt %12 : vector<1x256xf32>
    %cst_6 = arith.constant 9.99999996E-13 : f32
    %14 = vector.broadcast %cst_6 : f32 to vector<1x256xf32>
    %15 = arith.maximumf %13, %14 : vector<1x256xf32>
    %cst_7 = arith.constant 1.000000e+00 : f32
    %16 = vector.broadcast %cst_7 : f32 to vector<1x256xf32>
    %17 = arith.divf %16, %15 : vector<1x256xf32>
    %18 = vector.broadcast %17 : vector<1x256xf32> to vector<8x256xf32>
    %19 = arith.mulf %9, %18 : vector<8x256xf32>
    %20 = arith.truncf %19 : vector<8x256xf32> to vector<8x256xbf16>
    %c0_8 = arith.constant 0 : index
    %c0_9 = arith.constant 0 : index
    %c0_10 = arith.constant 0 : index
    %21 = vector.load %arg8[%c0_8, %c0_9, %c0_10] : memref<1x32x8xbf16, #tpu.memory_space<vmem>>, vector<1x32x8xbf16>
    %22 = vector.shape_cast %21 : vector<1x32x8xbf16> to vector<32x8xbf16>
    %cst_11 = arith.constant dense<0.000000e+00> : vector<32x256xf32>
    %23 = tpu.matmul %22, %20, %cst_11 {dimension_numbers = #tpu.dot_dimension_numbers<[1], [0], [0], [1], [0, 0, 1, 1], [], []>} : vector<32x8xbf16>, vector<8x256xbf16>, vector<32x256xf32> -> vector<32x256xf32>
    %24 = tpu.transpose %19, [1, 0] : vector<8x256xf32> -> vector<256x8xf32>
    %25 = arith.truncf %24 : vector<256x8xf32> to vector<256x8xbf16>
    %c0_12 = arith.constant 0 : index
    %c0_13 = arith.constant 0 : index
    %c0_14 = arith.constant 0 : index
    %26 = vector.load %arg7[%c0_12, %c0_13, %c0_14] : memref<1x8x32xbf16, #tpu.memory_space<vmem>>, vector<1x8x32xbf16>
    %27 = vector.shape_cast %26 : vector<1x8x32xbf16> to vector<8x32xbf16>
    %cst_15 = arith.constant dense<0.000000e+00> : vector<256x32xf32>
    %28 = tpu.matmul %25, %27, %cst_15 {dimension_numbers = #tpu.dot_dimension_numbers<[1], [0], [0], [1], [0, 0, 1, 1], [], []>} : vector<256x8xbf16>, vector<8x32xbf16>, vector<256x32xf32> -> vector<256x32xf32>
    %29 = arith.truncf %28 : vector<256x32xf32> to vector<256x32xbf16>
    %c0_16 = arith.constant 0 : index
    %c0_17 = arith.constant 0 : index
    %30 = vector.load %arg15[%c0_16, %c0_17] : memref<32x256xbf16, #tpu.memory_space<vmem>>, vector<32x256xbf16>
    %cst_18 = arith.constant dense<0.000000e+00> : vector<256x256xf32>
    %31 = tpu.matmul %29, %30, %cst_18 {dimension_numbers = #tpu.dot_dimension_numbers<[1], [0], [0], [1], [0, 0, 1, 1], [], []>} : vector<256x32xbf16>, vector<32x256xbf16>, vector<256x256xf32> -> vector<256x256xf32>
    %c0_19 = arith.constant 0 : index
    %c0_20 = arith.constant 0 : index
    %32 = vector.load %arg16[%c0_19, %c0_20] : memref<1x256xf32, #tpu.memory_space<vmem>>, vector<1x256xf32>
    %cst_21 = arith.constant dense<0xFF800000> : vector<256xf32>
    %33 = vector.multi_reduction <maximumf>, %31, %cst_21 [0] : vector<256x256xf32> to vector<256xf32>
    %34 = vector.shape_cast %33 : vector<256xf32> to vector<1x256xf32>
    %35 = arith.maximumf %32, %34 : vector<1x256xf32>
    %36 = arith.subf %32, %35 : vector<1x256xf32>
    %37 = math.exp %36 : vector<1x256xf32>
    %38 = vector.broadcast %35 : vector<1x256xf32> to vector<256x256xf32>
    %39 = arith.subf %31, %38 : vector<256x256xf32>
    %40 = math.exp %39 : vector<256x256xf32>
    %c0_22 = arith.constant 0 : index
    %c0_23 = arith.constant 0 : index
    %41 = vector.load %arg17[%c0_22, %c0_23] : memref<1x256xf32, #tpu.memory_space<vmem>>, vector<1x256xf32>
    %42 = arith.mulf %37, %41 : vector<1x256xf32>
    %cst_24 = arith.constant dense<0.000000e+00> : vector<256xf32>
    %43 = vector.multi_reduction <add>, %40, %cst_24 [0] : vector<256x256xf32> to vector<256xf32>
    %44 = vector.shape_cast %43 : vector<256xf32> to vector<1x256xf32>
    %45 = arith.addf %42, %44 : vector<1x256xf32>
    %c0_25 = arith.constant 0 : index
    %c0_26 = arith.constant 0 : index
    %46 = vector.load %arg17[%c0_25, %c0_26] : memref<1x256xf32, #tpu.memory_space<vmem>>, vector<1x256xf32>
    tpu.vector_store %arg17[%c0_25, %c0_26], %45 {strides = array<i32>} : memref<1x256xf32, #tpu.memory_space<vmem>>, vector<1x256xf32>,
    %c0_27 = arith.constant 0 : index
    %c0_28 = arith.constant 0 : index
    %47 = vector.load %arg18[%c0_27, %c0_28] : memref<32x256xf32, #tpu.memory_space<vmem>>, vector<32x256xf32>
    %48 = vector.broadcast %37 : vector<1x256xf32> to vector<32x256xf32>
    %49 = arith.mulf %48, %47 : vector<32x256xf32>
    %50 = arith.truncf %23 : vector<32x256xf32> to vector<32x256xbf16>
    %51 = arith.truncf %40 : vector<256x256xf32> to vector<256x256xbf16>
    %cst_29 = arith.constant dense<0.000000e+00> : vector<32x256xf32>
    %52 = tpu.matmul %50, %51, %cst_29 {dimension_numbers = #tpu.dot_dimension_numbers<[1], [0], [0], [1], [0, 0, 1, 1], [], []>} : vector<32x256xbf16>, vector<256x256xbf16>, vector<32x256xf32> -> vector<32x256xf32>
    %53 = arith.addf %49, %52 : vector<32x256xf32>
    %c0_30 = arith.constant 0 : index
    %c0_31 = arith.constant 0 : index
    %54 = vector.load %arg18[%c0_30, %c0_31] : memref<32x256xf32, #tpu.memory_space<vmem>>, vector<32x256xf32>
    tpu.vector_store %arg18[%c0_30, %c0_31], %53 {strides = array<i32>} : memref<32x256xf32, #tpu.memory_space<vmem>>, vector<32x256xf32>,
    %c0_32 = arith.constant 0 : index
    %c0_33 = arith.constant 0 : index
    %55 = vector.load %arg16[%c0_32, %c0_33] : memref<1x256xf32, #tpu.memory_space<vmem>>, vector<1x256xf32>
    tpu.vector_store %arg16[%c0_32, %c0_33], %35 {strides = array<i32>} : memref<1x256xf32, #tpu.memory_space<vmem>>, vector<1x256xf32>,
    %c1_i32 = arith.constant 1 : i32
    %56 = arith.cmpi eq, %arg3, %c1_i32 : i32
    %57 = arith.extui %56 : i1 to i32
    %c0_i32_34 = arith.constant 0 : i32
    %58 = arith.cmpi ne, %57, %c0_i32_34 : i32
    scf.if %58 {
      %c0_35 = arith.constant 0 : index
      %c0_36 = arith.constant 0 : index
      %59 = vector.load %arg18[%c0_35, %c0_36] : memref<32x256xf32, #tpu.memory_space<vmem>>, vector<32x256xf32>
      %c0_37 = arith.constant 0 : index
      %c0_38 = arith.constant 0 : index
      %60 = vector.load %arg17[%c0_37, %c0_38] : memref<1x256xf32, #tpu.memory_space<vmem>>, vector<1x256xf32>
      %61 = tpu.reciprocal %60 {approx = true} : vector<1x256xf32> -> vector<1x256xf32>
      %62 = vector.broadcast %61 : vector<1x256xf32> to vector<32x256xf32>
      %63 = arith.mulf %59, %62 : vector<32x256xf32>
      %c0_39 = arith.constant 0 : index
      %c0_40 = arith.constant 0 : index
      %c0_41 = arith.constant 0 : index
      %64 = vector.load %arg13[%c0_39, %c0_40, %c0_41] : memref<1x8x256xf32, #tpu.memory_space<vmem>>, vector<1x8x256xf32>
      %65 = vector.shape_cast %64 : vector<1x8x256xf32> to vector<8x256xf32>
      %c0_42 = arith.constant 0 : index
      %c0_43 = arith.constant 0 : index
      %c0_44 = arith.constant 0 : index
      %66 = vector.load %arg9[%c0_42, %c0_43, %c0_44] : memref<1x8x32xbf16, #tpu.memory_space<vmem>>, vector<1x8x32xbf16>
      %67 = vector.shape_cast %66 : vector<1x8x32xbf16> to vector<8x32xbf16>
      %68 = arith.truncf %63 : vector<32x256xf32> to vector<32x256xbf16>
      %cst_45 = arith.constant dense<0.000000e+00> : vector<8x256xf32>
      %69 = tpu.matmul %67, %68, %cst_45 {dimension_numbers = #tpu.dot_dimension_numbers<[1], [0], [0], [1], [0, 0, 1, 1], [], []>} : vector<8x32xbf16>, vector<32x256xbf16>, vector<8x256xf32> -> vector<8x256xf32>
      %70 = arith.addf %65, %69 : vector<8x256xf32>
      %c0_46 = arith.constant 0 : index
      %c0_47 = arith.constant 0 : index
      %c0_48 = arith.constant 0 : index
      %71 = vector.load %arg13[%c0_46, %c0_47, %c0_48] : memref<1x8x256xf32, #tpu.memory_space<vmem>>, vector<1x8x256xf32>
      %72 = vector.shape_cast %71 : vector<1x8x256xf32> to vector<8x256xf32>
      %73 = vector.shape_cast %70 : vector<8x256xf32> to vector<1x8x256xf32>
      tpu.vector_store %arg13[%c0_46, %c0_47, %c0_48], %73 {strides = array<i32>} : memref<1x8x256xf32, #tpu.memory_space<vmem>>, vector<1x8x256xf32>,
    } else {
    }
    return
  }
  func.func @transform_0(%arg0: i32, %arg1: i32, %arg2: i32, %arg3: i32) -> (i32, i32, i32) {
    %c0_i32 = arith.constant 0 : i32
    %c0_i32_0 = arith.constant 0 : i32
    return %arg0, %c0_i32, %arg1 : i32, i32, i32
  }
  func.func @transform_1(%arg0: i32, %arg1: i32, %arg2: i32, %arg3: i32) -> (i32, i32, i32) {
    %c0_i32 = arith.constant 0 : i32
    %c0_i32_0 = arith.constant 0 : i32
    return %arg0, %c0_i32, %arg3 : i32, i32, i32
  }
  func.func @transform_2(%arg0: i32, %arg1: i32, %arg2: i32, %arg3: i32) -> (i32, i32, i32) {
    %c0_i32 = arith.constant 0 : i32
    %c0_i32_0 = arith.constant 0 : i32
    %c0_i32_1 = arith.constant 0 : i32
    return %arg2, %c0_i32, %c0_i32_0 : i32, i32, i32
  }
  func.func @transform_3(%arg0: i32, %arg1: i32, %arg2: i32, %arg3: i32) -> (i32, i32, i32) {
    %c0_i32 = arith.constant 0 : i32
    %c0_i32_0 = arith.constant 0 : i32
    %c0_i32_1 = arith.constant 0 : i32
    return %arg2, %c0_i32, %c0_i32_0 : i32, i32, i32
  }
  func.func @transform_4(%arg0: i32, %arg1: i32, %arg2: i32, %arg3: i32) -> (i32, i32, i32) {
    %c0_i32 = arith.constant 0 : i32
    %c0_i32_0 = arith.constant 0 : i32
    %c0_i32_1 = arith.constant 0 : i32
    return %arg2, %c0_i32, %c0_i32_0 : i32, i32, i32
  }
  func.func @transform_5(%arg0: i32, %arg1: i32, %arg2: i32, %arg3: i32) -> (i32, i32, i32) {
    %c0_i32 = arith.constant 0 : i32
    %c0_i32_0 = arith.constant 0 : i32
    %c0_i32_1 = arith.constant 0 : i32
    return %arg2, %c0_i32, %c0_i32_0 : i32, i32, i32
  }
  func.func @transform_6(%arg0: i32, %arg1: i32, %arg2: i32, %arg3: i32) -> (i32, i32) {
    %c0_i32 = arith.constant 0 : i32
    %c0_i32_0 = arith.constant 0 : i32
    %c0_i32_1 = arith.constant 0 : i32
    return %c0_i32, %c0_i32_0 : i32, i32
  }
  func.func @transform_7(%arg0: i32, %arg1: i32, %arg2: i32, %arg3: i32) -> (i32, i32, i32) {
    %c0_i32 = arith.constant 0 : i32
    %c0_i32_0 = arith.constant 0 : i32
    %c0_i32_1 = arith.constant 0 : i32
    return %arg2, %c0_i32, %c0_i32_0 : i32, i32, i32
  }
  func.func @transform_8(%arg0: i32, %arg1: i32, %arg2: i32, %arg3: i32) -> (i32, i32, i32) {
    %c0_i32 = arith.constant 0 : i32
    %c0_i32_0 = arith.constant 0 : i32
    %c0_i32_1 = arith.constant 0 : i32
    return %arg2, %c0_i32, %c0_i32_0 : i32, i32, i32
  }
  func.func @transform_9(%arg0: i32, %arg1: i32, %arg2: i32, %arg3: i32) -> (i32, i32, i32) {
    %c0_i32 = arith.constant 0 : i32
    %c0_i32_0 = arith.constant 0 : i32
    return %arg0, %c0_i32, %arg1 : i32, i32, i32
  }
}

</mosaic_0001>

<llo_original>
// kernel: tpu_custom_call.1
$region0: #{tpu_custom_call.1}
  #allocation0 [shape = 'u32[]', space=smem, size = 0x4, offset = 0x4, fixed_abs, tag = 'smem constant byte address 0x4 - core index']
  #allocation1 [shape = 'u32[72,128]{1,0:T(1,128)}', space=vmem, size = 0x9000, scoped, tag = 'internal scratch']
  #allocation2 [shape = 'f32[8,256]{1,0:T(8,128)}', space=vmem, size = 0x2000, scoped, tag = 'scratch operand']
  #allocation3 [shape = 'bf16[32,256]{1,0:T(8,128)(2,1)}', space=vmem, size = 0x4000, scoped, tag = 'scratch operand']
  #allocation4 [shape = 'f32[1,256]{1,0:T(1,128)}', space=vmem, size = 0x400, scoped, tag = 'scratch operand']
  #allocation5 [shape = 'f32[1,256]{1,0:T(1,128)}', space=vmem, size = 0x400, scoped, tag = 'scratch operand']
  #allocation6 [shape = 'f32[32,256]{1,0:T(8,128)}', space=vmem, size = 0x8000, scoped, tag = 'scratch operand']
  %s0 = inlined_call_operand.vmem [shape: f32[2,8,512], index: 0, kind: input, shape index: {}]
  %s1 = inlined_call_operand.vmem [shape: f32[2,8,512], index: 1, kind: input, shape index: {}]
  %s2 = inlined_call_operand.vmem [shape: bf16[4,32,8], index: 2, kind: input, shape index: {}]
  %s3 = inlined_call_operand.vmem [shape: bf16[4,8,32], index: 3, kind: input, shape index: {}]
  %s4 = inlined_call_operand.vmem [shape: bf16[4,32,8], index: 4, kind: input, shape index: {}]
  %s5 = inlined_call_operand.vmem [shape: bf16[4,8,32], index: 5, kind: input, shape index: {}]
  %s6 = inlined_call_operand.vmem [shape: f32[8,1], index: 6, kind: input, shape index: {}]
  %s7 = inlined_call_operand.vmem [shape: bf16[4,4,32], index: 7, kind: input, shape index: {}]
  %s8 = inlined_call_operand.vmem [shape: bf16[4,32,4], index: 8, kind: input, shape index: {}]
  %s9 = inlined_call_operand.hbm [shape: f32[2,8,512], index: 9, kind: output, shape index: {}]
  %s10 = sld [smem:[#allocation0]]
  $region81: #{tpu_custom_call.1} parent=0
    _
  %s12 = ssub.s32 1, %s10
  %s13 = scalar_select 0, %s12, %s10
  $region1: #{tpu_custom_call.1} parent=0
    #allocation7 [shape = 'u8[16384]{0}', space=vmem, size = 0x4000, scoped, tag = 'output window, operand 0']
    #allocation8 [shape = 's32[2]{0}', space=sflag, size = 0x8, scoped, tag = 'scoped memory for tpu_custom_call.1']
    %14 = vsyncpa [#allocation8], 0
    %s15 = scalar_lea.sflag [#allocation8], 1
    %16 = vsyncpa %s15, 0
    loop: start=0, step=1, limit=34
    $region2: #{tpu_custom_call.1} parent=1 // loop_pre_header
      _
    $region3: #{tpu_custom_call.1} parent=1 // loop_header
      %s18 = sphi 0, %s22
      %p19 = scmp.ge.s32.totalorder %s18, 34
      %s25 = sphi 0, %s51
      %s26 = sphi 0, %s47
      %s27 = sphi 0, %s43
      %s28 = sphi 0, %s39
      %s29 = sphi 0, %s25
      %s30 = sphi 0, %s26
      %s31 = sphi 0, %s27
      %s32 = sphi 0, %s28
      %s33 = sphi 0, %s29
      %s34 = sphi 0, %s30
      %s35 = sphi 0, %s31
      %s36 = sphi 0, %s32
      %s56 = sphi 0, %s58
      %s59 = sphi 0, %s56
      %s60 = sphi 0, %s59
      %s76 = sphi 0, %s60
      %s84 = sphi 0, %s86
      %s87 = sphi 0, %s84
      %s88 = sphi 0, %s87
      %s104 = sphi 0, %s88
      %s110 = sphi 0, %s112
      %s113 = sphi 0, %s110
      %s114 = sphi 0, %s113
      %s130 = sphi 0, %s114
      %s136 = sphi 0, %s138
      %s139 = sphi 0, %s136
      %s140 = sphi 0, %s139
      %s156 = sphi 0, %s140
      %s162 = sphi 0, %s164
      %s165 = sphi 0, %s162
      %s166 = sphi 0, %s165
      %s182 = sphi 0, %s166
      %s188 = sphi 0, %s190
      %s191 = sphi 0, %s188
      %s192 = sphi 0, %s191
      %s208 = sphi 0, %s192
      %s212 = sphi 0, %s212
      %s214 = sphi 0, %s212
      %s215 = sphi 0, %s214
      %s229 = sphi 0, %s215
      %s235 = sphi 0, %s237
      %s238 = sphi 0, %s235
      %s239 = sphi 0, %s238
      %s255 = sphi 0, %s239
      %s261 = sphi 0, %s263
      %s264 = sphi 0, %s261
      %s265 = sphi 0, %s264
      %s281 = sphi 0, %s265
      %s289 = sphi 0, %s291
      %s292 = sphi 0, %s289
      %s293 = sphi 0, %s292
      %s309 = sphi 0, %s293
    $region4: #{tpu_custom_call.1} parent=1 // loop_header_branch
      %21 = sbr.rel (%p19) target = $region8
    $region5: #{tpu_custom_call.1} parent=1 // loop_body
      %s23 = ssub.s32 %s18, 1
      %s24 = ssub.s32 %s18, 2
      %s37 = sadd.s32 1, %s28
      %p38 = scmp.ge.s32.totalorder %s37, 2
      %s39 = scalar_select %p38, 0, %s37
      %s40 = sadd.s32 1, %s27
      %s41 = scalar_select %p38, %s40, %s27
      %p42 = scmp.ge.s32.totalorder %s41, 4
      %s43 = scalar_select %p42, 0, %s41
      %s44 = sadd.s32 1, %s26
      %s45 = scalar_select %p42, %s44, %s26
      %p46 = scmp.ge.s32.totalorder %s45, 2
      %s47 = scalar_select %p46, 0, %s45
      %s48 = sadd.s32 1, %s25
      %s49 = scalar_select %p46, %s48, %s25
      %p50 = scmp.ge.s32.totalorder %s49, 2
      %s51 = scalar_select %p50, 0, %s49
      %s52 = ssub.s32 %s25, %s51
      %s53 = ssub.s32 %s26, %s47
      %s54 = sor.u32 %s52, %s53
      %p55 = scmp.eq.s32.totalorder %s54, 0
      %s57 = sadd.s32 %s56, 1
      %s58 = scalar_select %p55, %s56, %s57
      %p61 = pneg %p55
      %p62 = scmp.eq.s32.totalorder %s18, 31
      %p63 = por %p61, %p62
      %p64 = scmp.ne.s32.totalorder %s56, %s59
      %p65 = scmp.eq.s32.totalorder %s18, 0
      %p66 = por %p64, %p65
      %p67 = scmp.ne.s32.totalorder %s56, %s59
      %p68 = scmp.eq.s32.totalorder %s23, 31
      %p69 = por %p67, %p68
      %p70 = scmp.ne.s32.totalorder %s59, %s60
      %p71 = scmp.eq.s32.totalorder %s23, 0
      %p72 = por %p70, %p71
      %p73 = scmp.ne.s32.totalorder %s59, %s60
      %p74 = scmp.eq.s32.totalorder %s24, 31
      %p75 = por %p73, %p74
      %p77 = scmp.ne.s32.totalorder %s60, %s76
      %p78 = scmp.eq.s32.totalorder %s24, 0
      %p79 = por %p77, %p78
      %s80 = ssub.s32 %s25, %s51
      %s81 = ssub.s32 %s28, %s39
      %s82 = sor.u32 %s80, %s81
      %p83 = scmp.eq.s32.totalorder %s82, 0
      %s85 = sadd.s32 %s84, 1
      %s86 = scalar_select %p83, %s84, %s85
      %p89 = pneg %p83
      %p90 = scmp.eq.s32.totalorder %s18, 31
      %p91 = por %p89, %p90
      %p92 = scmp.ne.s32.totalorder %s84, %s87
      %p93 = scmp.eq.s32.totalorder %s18, 0
      %p94 = por %p92, %p93
      %p95 = scmp.ne.s32.totalorder %s84, %s87
      %p96 = scmp.eq.s32.totalorder %s23, 31
      %p97 = por %p95, %p96
      %p98 = scmp.ne.s32.totalorder %s87, %s88
      %p99 = scmp.eq.s32.totalorder %s23, 0
      %p100 = por %p98, %p99
      %p101 = scmp.ne.s32.totalorder %s87, %s88
      %p102 = scmp.eq.s32.totalorder %s24, 31
      %p103 = por %p101, %p102
      %p105 = scmp.ne.s32.totalorder %s88, %s104
      %p106 = scmp.eq.s32.totalorder %s24, 0
      %p107 = por %p105, %p106
      %s108 = ssub.s32 %s27, %s43
      %p109 = scmp.eq.s32.totalorder %s108, 0
      %s111 = sadd.s32 %s110, 1
      %s112 = scalar_select %p109, %s110, %s111
      %p115 = pneg %p109
      %p116 = scmp.eq.s32.totalorder %s18, 31
      %p117 = por %p115, %p116
      %p118 = scmp.ne.s32.totalorder %s110, %s113
      %p119 = scmp.eq.s32.totalorder %s18, 0
      %p120 = por %p118, %p119
      %p121 = scmp.ne.s32.totalorder %s110, %s113
      %p122 = scmp.eq.s32.totalorder %s23, 31
      %p123 = por %p121, %p122
      %p124 = scmp.ne.s32.totalorder %s113, %s114
      %p125 = scmp.eq.s32.totalorder %s23, 0
      %p126 = por %p124, %p125
      %p127 = scmp.ne.s32.totalorder %s113, %s114
      %p128 = scmp.eq.s32.totalorder %s24, 31
      %p129 = por %p127, %p128
      %p131 = scmp.ne.s32.totalorder %s114, %s130
      %p132 = scmp.eq.s32.totalorder %s24, 0
      %p133 = por %p131, %p132
      %s134 = ssub.s32 %s27, %s43
      %p135 = scmp.eq.s32.totalorder %s134, 0
      %s137 = sadd.s32 %s136, 1
      %s138 = scalar_select %p135, %s136, %s137
      %p141 = pneg %p135
      %p142 = scmp.eq.s32.totalorder %s18, 31
      %p143 = por %p141, %p142
      %p144 = scmp.ne.s32.totalorder %s136, %s139
      %p145 = scmp.eq.s32.totalorder %s18, 0
      %p146 = por %p144, %p145
      %p147 = scmp.ne.s32.totalorder %s136, %s139
      %p148 = scmp.eq.s32.totalorder %s23, 31
      %p149 = por %p147, %p148
      %p150 = scmp.ne.s32.totalorder %s139, %s140
      %p151 = scmp.eq.s32.totalorder %s23, 0
      %p152 = por %p150, %p151
      %p153 = scmp.ne.s32.totalorder %s139, %s140
      %p154 = scmp.eq.s32.totalorder %s24, 31
      %p155 = por %p153, %p154
      %p157 = scmp.ne.s32.totalorder %s140, %s156
      %p158 = scmp.eq.s32.totalorder %s24, 0
      %p159 = por %p157, %p158
      %s160 = ssub.s32 %s27, %s43
      %p161 = scmp.eq.s32.totalorder %s160, 0
      %s163 = sadd.s32 %s162, 1
      %s164 = scalar_select %p161, %s162, %s163
      %p167 = pneg %p161
      %p168 = scmp.eq.s32.totalorder %s18, 31
      %p169 = por %p167, %p168
      %p170 = scmp.ne.s32.totalorder %s162, %s165
      %p171 = scmp.eq.s32.totalorder %s18, 0
      %p172 = por %p170, %p171
      %p173 = scmp.ne.s32.totalorder %s162, %s165
      %p174 = scmp.eq.s32.totalorder %s23, 31
      %p175 = por %p173, %p174
      %p176 = scmp.ne.s32.totalorder %s165, %s166
      %p177 = scmp.eq.s32.totalorder %s23, 0
      %p178 = por %p176, %p177
      %p179 = scmp.ne.s32.totalorder %s165, %s166
      %p180 = scmp.eq.s32.totalorder %s24, 31
      %p181 = por %p179, %p180
      %p183 = scmp.ne.s32.totalorder %s166, %s182
      %p184 = scmp.eq.s32.totalorder %s24, 0
      %p185 = por %p183, %p184
      %s186 = ssub.s32 %s27, %s43
      %p187 = scmp.eq.s32.totalorder %s186, 0
      %s189 = sadd.s32 %s188, 1
      %s190 = scalar_select %p187, %s188, %s189
      %p193 = pneg %p187
      %p194 = scmp.eq.s32.totalorder %s18, 31
      %p195 = por %p193, %p194
      %p196 = scmp.ne.s32.totalorder %s188, %s191
      %p197 = scmp.eq.s32.totalorder %s18, 0
      %p198 = por %p196, %p197
      %p199 = scmp.ne.s32.totalorder %s188, %s191
      %p200 = scmp.eq.s32.totalorder %s23, 31
      %p201 = por %p199, %p200
      %p202 = scmp.ne.s32.totalorder %s191, %s192
      %p203 = scmp.eq.s32.totalorder %s23, 0
      %p204 = por %p202, %p203
      %p205 = scmp.ne.s32.totalorder %s191, %s192
      %p206 = scmp.eq.s32.totalorder %s24, 31
      %p207 = por %p205, %p206
      %p209 = scmp.ne.s32.totalorder %s192, %s208
      %p210 = scmp.eq.s32.totalorder %s24, 0
      %p211 = por %p209, %p210
      %s213 = sadd.s32 %s212, 1
      %p216 = scmp.eq.s32.totalorder %s18, 31
      %p217 = scmp.ne.s32.totalorder %s212, %s214
      %p218 = scmp.eq.s32.totalorder %s18, 0
      %p219 = por %p217, %p218
      %p220 = scmp.ne.s32.totalorder %s212, %s214
      %p221 = scmp.eq.s32.totalorder %s23, 31
      %p222 = por %p220, %p221
      %p223 = scmp.ne.s32.totalorder %s214, %s215
      %p224 = scmp.eq.s32.totalorder %s23, 0
      %p225 = por %p223, %p224
      %p226 = scmp.ne.s32.totalorder %s214, %s215
      %p227 = scmp.eq.s32.totalorder %s24, 31
      %p228 = por %p226, %p227
      %p230 = scmp.ne.s32.totalorder %s215, %s229
      %p231 = scmp.eq.s32.totalorder %s24, 0
      %p232 = por %p230, %p231
      %s233 = ssub.s32 %s27, %s43
      %p234 = scmp.eq.s32.totalorder %s233, 0
      %s236 = sadd.s32 %s235, 1
      %s237 = scalar_select %p234, %s235, %s236
      %p240 = pneg %p234
      %p241 = scmp.eq.s32.totalorder %s18, 31
      %p242 = por %p240, %p241
      %p243 = scmp.ne.s32.totalorder %s235, %s238
      %p244 = scmp.eq.s32.totalorder %s18, 0
      %p245 = por %p243, %p244
      %p246 = scmp.ne.s32.totalorder %s235, %s238
      %p247 = scmp.eq.s32.totalorder %s23, 31
      %p248 = por %p246, %p247
      %p249 = scmp.ne.s32.totalorder %s238, %s239
      %p250 = scmp.eq.s32.totalorder %s23, 0
      %p251 = por %p249, %p250
      %p252 = scmp.ne.s32.totalorder %s238, %s239
      %p253 = scmp.eq.s32.totalorder %s24, 31
      %p254 = por %p252, %p253
      %p256 = scmp.ne.s32.totalorder %s239, %s255
      %p257 = scmp.eq.s32.totalorder %s24, 0
      %p258 = por %p256, %p257
      %s259 = ssub.s32 %s27, %s43
      %p260 = scmp.eq.s32.totalorder %s259, 0
      %s262 = sadd.s32 %s261, 1
      %s263 = scalar_select %p260, %s261, %s262
      %p266 = pneg %p260
      %p267 = scmp.eq.s32.totalorder %s18, 31
      %p268 = por %p266, %p267
      %p269 = scmp.ne.s32.totalorder %s261, %s264
      %p270 = scmp.eq.s32.totalorder %s18, 0
      %p271 = por %p269, %p270
      %p272 = scmp.ne.s32.totalorder %s261, %s264
      %p273 = scmp.eq.s32.totalorder %s23, 31
      %p274 = por %p272, %p273
      %p275 = scmp.ne.s32.totalorder %s264, %s265
      %p276 = scmp.eq.s32.totalorder %s23, 0
      %p277 = por %p275, %p276
      %p278 = scmp.ne.s32.totalorder %s264, %s265
      %p279 = scmp.eq.s32.totalorder %s24, 31
      %p280 = por %p278, %p279
      %p282 = scmp.ne.s32.totalorder %s265, %s281
      %p283 = scmp.eq.s32.totalorder %s24, 0
      %p284 = por %p282, %p283
      %s285 = ssub.s32 %s25, %s51
      %s286 = ssub.s32 %s26, %s47
      %s287 = sor.u32 %s285, %s286
      %p288 = scmp.eq.s32.totalorder %s287, 0
      %s290 = sadd.s32 %s289, 1
      %s291 = scalar_select %p288, %s289, %s290
      %p294 = pneg %p288
      %p295 = scmp.eq.s32.totalorder %s18, 31
      %p296 = por %p294, %p295
      %p297 = scmp.ne.s32.totalorder %s289, %s292
      %p298 = scmp.eq.s32.totalorder %s18, 0
      %p299 = por %p297, %p298
      %p300 = scmp.ne.s32.totalorder %s289, %s292
      %p301 = scmp.eq.s32.totalorder %s23, 31
      %p302 = por %p300, %p301
      %p303 = scmp.ne.s32.totalorder %s292, %s293
      %p304 = scmp.eq.s32.totalorder %s23, 0
      %p305 = por %p303, %p304
      %p306 = scmp.ne.s32.totalorder %s292, %s293
      %p307 = scmp.eq.s32.totalorder %s24, 31
      %p308 = por %p306, %p307
      %p310 = scmp.ne.s32.totalorder %s293, %s309
      %p311 = scmp.eq.s32.totalorder %s24, 0
      %p312 = por %p310, %p311
      %p313 = scmp.le.s32.totalorder 1, %s18
      %p314 = scmp.lt.s32.totalorder %s18, 33
      %p315 = pnand %p313, %p314
      %p316 = pneg %p315
      // Predicated region
      $region9: #{tpu_custom_call.1} parent=5 // pred_check
        _
      $region10: #{tpu_custom_call.1} parent=5 // pred_check_branch
        %318 = sbr.rel (%p315) target = $region12
      $region11: #{tpu_custom_call.1} parent=5 // pred_region
        %s319 = ssub.s32 %s18, 1
        // Predicated region
        $region13: #{tpu_custom_call.1} parent=11 // pred_check
          %p320 = pneg %p225
        $region14: #{tpu_custom_call.1} parent=11 // pred_check_branch
          %322 = sbr.rel (%p320) target = $region16
        $region15: #{tpu_custom_call.1} parent=11 // pred_region
          _
        $region16: #{tpu_custom_call.1} parent=11 // pred_fallthru
          _
      $region12: #{tpu_custom_call.1} parent=5 // pred_fallthru
        _
      %p323 = scmp.lt.s32.totalorder %s18, 32
      // Predicated region
      $region17: #{tpu_custom_call.1} parent=5 // pred_check
        %p324 = pneg %p323
      $region18: #{tpu_custom_call.1} parent=5 // pred_check_branch
        %326 = sbr.rel (%p324) target = $region20
      $region19: #{tpu_custom_call.1} parent=5 // pred_region
        // Predicated region
        $region21: #{tpu_custom_call.1} parent=19 // pred_check
          %p327 = pneg %p66
        $region22: #{tpu_custom_call.1} parent=19 // pred_check_branch
          %329 = sbr.rel (%p327) target = $region24
        $region23: #{tpu_custom_call.1} parent=19 // pred_region
          %s330 = smul.u32 2, %s26
          %p331 = scmp.lt.s32.totalorder %s25, 1
          %s332 = scalar_select %p331, %s25, 1
          %p333 = scmp.lt.s32.totalorder %s330, 3
          %s334 = scalar_select %p333, %s330, 3
          %s335 = smul.addr %s332, 4
          %s336 = sadd.s32 %s334, %s335
          %s337 = smul.addr %s336, 8
          %s338 = scalar_lea.vmem %s0, %s337
          %s339 = smul.u32 2, %s26
        $region24: #{tpu_custom_call.1} parent=19 // pred_fallthru
          _
        // Predicated region
        $region25: #{tpu_custom_call.1} parent=19 // pred_check
          %p340 = pneg %p94
        $region26: #{tpu_custom_call.1} parent=19 // pred_check_branch
          %342 = sbr.rel (%p340) target = $region28
        $region27: #{tpu_custom_call.1} parent=19 // pred_region
          %s343 = smul.u32 2, %s28
          %p344 = scmp.lt.s32.totalorder %s25, 1
          %s345 = scalar_select %p344, %s25, 1
          %p346 = scmp.lt.s32.totalorder %s343, 3
          %s347 = scalar_select %p346, %s343, 3
          %s348 = smul.addr %s345, 4
          %s349 = sadd.s32 %s347, %s348
          %s350 = smul.addr %s349, 8
          %s351 = scalar_lea.vmem %s1, %s350
          %s352 = smul.u32 2, %s28
        $region28: #{tpu_custom_call.1} parent=19 // pred_fallthru
          _
        // Predicated region
        $region29: #{tpu_custom_call.1} parent=19 // pred_check
          %p353 = pneg %p120
        $region30: #{tpu_custom_call.1} parent=19 // pred_check_branch
          %355 = sbr.rel (%p353) target = $region32
        $region31: #{tpu_custom_call.1} parent=19 // pred_region
          %p356 = scmp.lt.s32.totalorder %s27, 3
          %s357 = scalar_select %p356, %s27, 3
          %s358 = smul.addr %s357, 4
          %s359 = smul.addr %s358, 4
          %s360 = scalar_lea.vmem %s2, %s359
        $region32: #{tpu_custom_call.1} parent=19 // pred_fallthru
          _
        // Predicated region
        $region33: #{tpu_custom_call.1} parent=19 // pred_check
          %p361 = pneg %p146
        $region34: #{tpu_custom_call.1} parent=19 // pred_check_branch
          %363 = sbr.rel (%p361) target = $region36
        $region35: #{tpu_custom_call.1} parent=19 // pred_region
          %p364 = scmp.lt.s32.totalorder %s27, 3
          %s365 = scalar_select %p364, %s27, 3
          %s366 = smul.addr %s365, 4
          %s367 = scalar_lea.vmem %s3, %s366
        $region36: #{tpu_custom_call.1} parent=19 // pred_fallthru
          _
        // Predicated region
        $region37: #{tpu_custom_call.1} parent=19 // pred_check
          %p368 = pneg %p172
        $region38: #{tpu_custom_call.1} parent=19 // pred_check_branch
          %370 = sbr.rel (%p368) target = $region40
        $region39: #{tpu_custom_call.1} parent=19 // pred_region
          %p371 = scmp.lt.s32.totalorder %s27, 3
          %s372 = scalar_select %p371, %s27, 3
          %s373 = smul.addr %s372, 4
          %s374 = smul.addr %s373, 4
          %s375 = scalar_lea.vmem %s4, %s374
        $region40: #{tpu_custom_call.1} parent=19 // pred_fallthru
          _
        // Predicated region
        $region41: #{tpu_custom_call.1} parent=19 // pred_check
          %p376 = pneg %p198
        $region42: #{tpu_custom_call.1} parent=19 // pred_check_branch
          %378 = sbr.rel (%p376) target = $region44
        $region43: #{tpu_custom_call.1} parent=19 // pred_region
          %p379 = scmp.lt.s32.totalorder %s27, 3
          %s380 = scalar_select %p379, %s27, 3
          %s381 = smul.addr %s380, 4
          %s382 = scalar_lea.vmem %s5, %s381
        $region44: #{tpu_custom_call.1} parent=19 // pred_fallthru
          _
        // Predicated region
        $region45: #{tpu_custom_call.1} parent=19 // pred_check
          %p383 = pneg %p245
        $region46: #{tpu_custom_call.1} parent=19 // pred_check_branch
          %385 = sbr.rel (%p383) target = $region48
        $region47: #{tpu_custom_call.1} parent=19 // pred_region
          %p386 = scmp.lt.s32.totalorder %s27, 3
          %s387 = scalar_select %p386, %s27, 3
          %s388 = smul.addr %s387, 2
          %s389 = scalar_lea.vmem %s7, %s388
        $region48: #{tpu_custom_call.1} parent=19 // pred_fallthru
          _
        // Predicated region
        $region49: #{tpu_custom_call.1} parent=19 // pred_check
          %p390 = pneg %p271
        $region50: #{tpu_custom_call.1} parent=19 // pred_check_branch
          %392 = sbr.rel (%p390) target = $region52
        $region51: #{tpu_custom_call.1} parent=19 // pred_region
          %p393 = scmp.lt.s32.totalorder %s27, 3
          %s394 = scalar_select %p393, %s27, 3
          %s395 = smul.addr %s394, 4
          %s396 = smul.addr %s395, 4
          %s397 = scalar_lea.vmem %s8, %s396
        $region52: #{tpu_custom_call.1} parent=19 // pred_fallthru
          _
      $region20: #{tpu_custom_call.1} parent=5 // pred_fallthru
        _
      %p398 = scmp.le.s32.totalorder 1, %s18
      %p399 = scmp.lt.s32.totalorder %s18, 33
      %p400 = pnand %p398, %p399
      %p401 = pneg %p400
      // Predicated region
      $region53: #{tpu_custom_call.1} parent=5 // pred_check
        _
      $region54: #{tpu_custom_call.1} parent=5 // pred_check_branch
        %403 = sbr.rel (%p400) target = $region56
      $region55: #{tpu_custom_call.1} parent=5 // pred_region
        %s404 = ssub.s32 %s18, 1
        %s405 = smul.u32 2, %s30
        %p406 = scmp.lt.s32.totalorder %s29, 1
        %s407 = scalar_select %p406, %s29, 1
        %p408 = scmp.lt.s32.totalorder %s405, 3
        %s409 = scalar_select %p408, %s405, 3
        %s410 = smul.addr %s407, 4
        %s411 = sadd.s32 %s409, %s410
        %s412 = smul.addr %s411, 8
        %s413 = scalar_lea.vmem %s0, %s412
        %p414 = pneg %p72
        %p415 = pneg %p69
        %s416 = smul.u32 2, %s32
        %p417 = scmp.lt.s32.totalorder %s29, 1
        %s418 = scalar_select %p417, %s29, 1
        %p419 = scmp.lt.s32.totalorder %s416, 3
        %s420 = scalar_select %p419, %s416, 3
        %s421 = smul.addr %s418, 4
        %s422 = sadd.s32 %s420, %s421
        %s423 = smul.addr %s422, 8
        %s424 = scalar_lea.vmem %s1, %s423
        %p425 = pneg %p100
        %p426 = pneg %p97
        %p427 = scmp.lt.s32.totalorder %s31, 3
        %s428 = scalar_select %p427, %s31, 3
        %s429 = smul.addr %s428, 4
        %s430 = smul.addr %s429, 4
        %s431 = scalar_lea.vmem %s2, %s430
        %p432 = pneg %p126
        %p433 = pneg %p123
        %p434 = scmp.lt.s32.totalorder %s31, 3
        %s435 = scalar_select %p434, %s31, 3
        %s436 = smul.addr %s435, 4
        %s437 = scalar_lea.vmem %s3, %s436
        %p438 = pneg %p152
        %p439 = pneg %p149
        %p440 = scmp.lt.s32.totalorder %s31, 3
        %s441 = scalar_select %p440, %s31, 3
        %s442 = smul.addr %s441, 4
        %s443 = smul.addr %s442, 4
        %s444 = scalar_lea.vmem %s4, %s443
        %p445 = pneg %p178
        %p446 = pneg %p175
        %p447 = scmp.lt.s32.totalorder %s31, 3
        %s448 = scalar_select %p447, %s31, 3
        %s449 = smul.addr %s448, 4
        %s450 = scalar_lea.vmem %s5, %s449
        %p451 = pneg %p204
        %p452 = pneg %p201
        %p453 = pneg %p225
        %p454 = pneg %p222
        %p455 = scmp.lt.s32.totalorder %s31, 3
        %s456 = scalar_select %p455, %s31, 3
        %s457 = smul.addr %s456, 2
        %s458 = scalar_lea.vmem %s7, %s457
        %p459 = pneg %p251
        %p460 = pneg %p248
        %p461 = scmp.lt.s32.totalorder %s31, 3
        %s462 = scalar_select %p461, %s31, 3
        %s463 = smul.addr %s462, 4
        %s464 = smul.addr %s463, 4
        %s465 = scalar_lea.vmem %s8, %s464
        %p466 = pneg %p277
        %p467 = pneg %p274
        %p468 = pneg %p305
        %p469 = pneg %p302
        %s470 = sand.u32 %s292, 1
        %s471 = scalar_lea.sflag [#allocation8], %s470
        %s472 = sand.u32 %s292, 1
        %s473 = smul.addr %s472, 16
        %s474 = scalar_lea.vmem [#allocation7], %s473
        %s475 = smul.u32 2, %s30
        %p476 = scmp.lt.s32.totalorder %s29, 1
        %s477 = scalar_select %p476, %s29, 1
        %p478 = scmp.lt.s32.totalorder %s475, 3
        %s479 = scalar_select %p478, %s475, 3
        %s480 = smul.addr %s477, 4
        %s481 = sadd.s32 %s479, %s480
        %s482 = smul.addr %s481, 8
        %s483 = scalar_lea.vmem %s0, %s482
        %s484 = smul.u32 2, %s30
        %s485 = smul.u32 2, %s32
        %p486 = scmp.lt.s32.totalorder %s29, 1
        %s487 = scalar_select %p486, %s29, 1
        %p488 = scmp.lt.s32.totalorder %s485, 3
        %s489 = scalar_select %p488, %s485, 3
        %s490 = smul.addr %s487, 4
        %s491 = sadd.s32 %s489, %s490
        %s492 = smul.addr %s491, 8
        %s493 = scalar_lea.vmem %s1, %s492
        %s494 = smul.u32 2, %s32
        %p495 = scmp.lt.s32.totalorder %s31, 3
        %s496 = scalar_select %p495, %s31, 3
        %s497 = smul.addr %s496, 4
        %s498 = smul.addr %s497, 4
        %s499 = scalar_lea.vmem %s2, %s498
        %p500 = scmp.lt.s32.totalorder %s31, 3
        %s501 = scalar_select %p500, %s31, 3
        %s502 = smul.addr %s501, 4
        %s503 = scalar_lea.vmem %s3, %s502
        %p504 = scmp.lt.s32.totalorder %s31, 3
        %s505 = scalar_select %p504, %s31, 3
        %s506 = smul.addr %s505, 4
        %s507 = smul.addr %s506, 4
        %s508 = scalar_lea.vmem %s4, %s507
        %p509 = scmp.lt.s32.totalorder %s31, 3
        %s510 = scalar_select %p509, %s31, 3
        %s511 = smul.addr %s510, 4
        %s512 = scalar_lea.vmem %s5, %s511
        %p513 = scmp.lt.s32.totalorder %s31, 3
        %s514 = scalar_select %p513, %s31, 3
        %s515 = smul.addr %s514, 2
        %s516 = scalar_lea.vmem %s7, %s515
        %p517 = scmp.lt.s32.totalorder %s31, 3
        %s518 = scalar_select %p517, %s31, 3
        %s519 = smul.addr %s518, 4
        %s520 = smul.addr %s519, 4
        %s521 = scalar_lea.vmem %s8, %s520
        %s522 = smul.u32 2, %s30
        %p524 = scmp.eq.s32.totalorder %s31, 0
        %p525 = scmp.eq.s32.totalorder %s32, 0
        %p526 = pnand %p524, %p525
        %p527 = pneg %p526
        // Predicated region
        $region57: #{tpu_custom_call.1} parent=55 // pred_check
          _
        $region58: #{tpu_custom_call.1} parent=55 // pred_check_branch
          %529 = sbr.rel (%p526) target = $region60
        $region59: #{tpu_custom_call.1} parent=55 // pred_region
          %v530 = vld [vmem:[%s483] sm:$0xff]
          %v531 = vld [vmem:[%s483 + $0x8] sm:$0xff]
          %v532 = vmul.f32 %v530, %v530
          %v533 = vmul.f32 %v531, %v531
          %v534 = vrot.slane %v532, 4
          %v535 = vadd.f32 %v532, %v534
          %v536 = vrot.slane %v535, 2
          %v537 = vadd.f32 %v535, %v536
          %v538 = vrot.slane %v537, 1
          %v539 = vadd.f32 %v537, %v538
          %v540 = vrot.slane %v533, 4
          %v541 = vadd.f32 %v533, %v540
          %v542 = vrot.slane %v541, 2
          %v543 = vadd.f32 %v541, %v542
          %v544 = vrot.slane %v543, 1
          %v545 = vadd.f32 %v543, %v544
          %v546 = vrsqrt.pop %v539
          %v547 = vmul.f32 %v546, %v539
          %v548 = vmul.f32 %v547, %v546
          %v549 = vmul.f32 0.5, %v548
          %v550 = vsub.f32 1.5, %v549
          %v551 = vmul.f32 %v546, %v550
          %v552 = vmul.f32 %v539, %v551
          %vm553 = vcmp.eq.f32.partialorder %v539, inf
          %v554 = vsel %vm553, %v539, %v552
          %vm555 = vcmp.eq.f32.partialorder %v539, 0.0
          %v556 = vand.u32 %v539, 2147483648
          %v557 = vsel %vm555, %v556, %v554
          %v558 = vrsqrt.pop %v545
          %v559 = vmul.f32 %v558, %v545
          %v560 = vmul.f32 %v559, %v558
          %v561 = vmul.f32 0.5, %v560
          %v562 = vsub.f32 1.5, %v561
          %v563 = vmul.f32 %v558, %v562
          %v564 = vmul.f32 %v545, %v563
          %vm565 = vcmp.eq.f32.partialorder %v545, inf
          %v566 = vsel %vm565, %v545, %v564
          %vm567 = vcmp.eq.f32.partialorder %v545, 0.0
          %v568 = vand.u32 %v545, 2147483648
          %v569 = vsel %vm567, %v568, %v566
          %v570 = vmax.f32 %v557, 1e-12
          %v571 = vmax.f32 %v569, 1e-12
          %v572 = vrcp.pop %v570
          %v573 = vmul.f32 %v570, %v572
          %v574 = vsub.f32 1.0, %v573
          %v575 = vmul.f32 %v572, %v574
          %v576 = vadd.f32 %v572, %v575
          %vm577 = vweird.f32 %v570
          %vm578 = vweird.f32 %v572
          %vm579 = vmor %vm577, %vm578
          %v580 = vsel %vm579, %v572, %v576
          %v581 = vand.u32 2147483647, %v570
          %vm582 = vcmp.eq.f32.partialorder %v581, 8.507059e+37
          %v583 = vand.u32 %v570, 2147483648
          %v584 = vor.u32 1.1754944e-38, %v583
          %v585 = vsel %vm582, %v584, %v580
          %v586 = vmul.f32 1.0, %v585
          %v587 = vrcp.pop %v571
          %v588 = vmul.f32 %v571, %v587
          %v589 = vsub.f32 1.0, %v588
          %v590 = vmul.f32 %v587, %v589
          %v591 = vadd.f32 %v587, %v590
          %vm592 = vweird.f32 %v571
          %vm593 = vweird.f32 %v587
          %vm594 = vmor %vm592, %vm593
          %v595 = vsel %vm594, %v587, %v591
          %v596 = vand.u32 2147483647, %v571
          %vm597 = vcmp.eq.f32.partialorder %v596, 8.507059e+37
          %v598 = vand.u32 %v571, 2147483648
          %v599 = vor.u32 1.1754944e-38, %v598
          %v600 = vsel %vm597, %v599, %v595
          %v601 = vmul.f32 1.0, %v600
          %v602 = vmul.f32 %v530, %v586
          %v603 = vmul.f32 %v531, %v601
          %604 = vst [vmem:[#allocation2] sm:$0xff] %v602
          %605 = vst [vmem:[#allocation2 + $0x8] sm:$0xff] %v603
          %v606 = vld [vmem:[%s6] sm:$0xff]
          %608 = vset.pattern.permute.xlu0 0
          %609 = vperm.xlu0 %608, %v606
          %v610 = vpop.permute.xlu0 %609
          %612 = vst [vmem:[%s474] sm:$0xff] %v610
          %613 = vst [vmem:[%s474 + $0x8] sm:$0xff] %v610
        $region60: #{tpu_custom_call.1} parent=55 // pred_fallthru
          _
        // Predicated region
        $region61: #{tpu_custom_call.1} parent=55 // pred_check
          %p614 = pneg %p525
        $region62: #{tpu_custom_call.1} parent=55 // pred_check_branch
          %616 = sbr.rel (%p614) target = $region64
        $region63: #{tpu_custom_call.1} parent=55 // pred_region
          %v617 = vld [vmem:[#allocation2] sm:$0xff]
          %v618 = vld [vmem:[#allocation2 + $0x8] sm:$0xff]
          %v619 = vpack.c.bf16 %v617, %v617
          %v620 = vpack.c.bf16 %v618, %v618
          %v621 = vld [vmem:[%s499] sm:$0xf]
          %v622 = vld [vmem:[%s499 + $0x4] sm:$0xf]
          %v623 = vld [vmem:[%s499 + $0x8] sm:$0xf]
          %v624 = vld [vmem:[%s499 + $0xc] sm:$0xf]
          %v629 = vunpack.c.l.b16 %v621
          %v630 = vunpack.c.l.b16 %v622
          %v631 = vunpack.c.l.b16 %v623
          %v632 = vunpack.c.l.b16 %v624
          %v633 = vpack.c.b16 %v630, %v629
          %v634 = vpack.c.b16 %v632, %v631
          %vm635 = vcmask 64512
          %v637 = vsel %vm635, %v633, 0
          %v640 = vsel %vm635, %v634, 0
          %vm642 = vcmask 1043456
          %v644 = vsel %vm642, %v619, 0
          %v647 = vsel %vm642, %v620, 0
          %649 = vmatpush.bf16.msra.mxu0 0
          %650 = vmatpush.bf16.msra.mxu0 0
          %651 = vmatpush.bf16.msra.mxu0 0
          %652 = vmatpush.bf16.msra.mxu0 0
          %653 = vmatpush.bf16.msra.mxu0 0
          %654 = vmatpush.bf16.msra.mxu0 0
          %655 = vmatpush.bf16.msra.mxu0 0
          %656 = vmatpush.bf16.msra.mxu0 %v644
          %657 = vmatmul.bf16.gmra.mxu0 %v637
          %v658 = vpop.f32.mrf.mxu0
          %v659 = vadd.f32 0.0, %v658
          %v660 = vpop.f32.mrf.mxu0
          %v661 = vadd.f32 0.0, %v660
          %662 = vmatmul.bf16.gmra.mxu0 %v640
          %v663 = vpop.f32.mrf.mxu0
          %v664 = vadd.f32 0.0, %v663
          %v665 = vpop.f32.mrf.mxu0
          %v666 = vadd.f32 0.0, %v665
          %667 = vdwg.mxu0
          %668 = vmatpush.bf16.msra.mxu0 0
          %669 = vmatpush.bf16.msra.mxu0 0
          %670 = vmatpush.bf16.msra.mxu0 0
          %671 = vmatpush.bf16.msra.mxu0 0
          %672 = vmatpush.bf16.msra.mxu0 0
          %673 = vmatpush.bf16.msra.mxu0 0
          %674 = vmatpush.bf16.msra.mxu0 0
          %675 = vmatpush.bf16.msra.mxu0 %v647
          %676 = vmatmul.bf16.gmra.mxu0 %v637
          %v677 = vpop.f32.mrf.mxu0
          %v678 = vadd.f32 0.0, %v677
          %v679 = vpop.f32.mrf.mxu0
          %v680 = vadd.f32 0.0, %v679
          %681 = vmatmul.bf16.gmra.mxu0 %v640
          %v682 = vpop.f32.mrf.mxu0
          %v683 = vadd.f32 0.0, %v682
          %v684 = vpop.f32.mrf.mxu0
          %v685 = vadd.f32 0.0, %v684
          %686 = vdwg.mxu0
          %v687 = vpack.c.bf16 %v678, %v659
          %v688 = vpack.c.bf16 %v680, %v661
          %v689 = vpack.c.bf16 %v683, %v664
          %v690 = vpack.c.bf16 %v685, %v666
          %691 = vst [vmem:[#allocation3] sm:$0xff] %v687
          %692 = vst [vmem:[#allocation3 + $0x8] sm:$0xff] %v688
          %693 = vst [vmem:[#allocation3 + $0x10] sm:$0xff] %v689
          %694 = vst [vmem:[#allocation3 + $0x18] sm:$0xff] %v690
          %v695 = vld [vmem:[%s516] sm:$0x3]
          %v696 = vld [vmem:[#allocation3] sm:$0xff]
          %v697 = vld [vmem:[#allocation3 + $0x8] sm:$0xff]
          %v698 = vld [vmem:[#allocation3 + $0x10] sm:$0xff]
          %v699 = vld [vmem:[#allocation3 + $0x18] sm:$0xff]
          %v704 = vunpack.c.l.b16 %v696
          %v705 = vunpack.c.h.b16 %v696
          %v706 = vunpack.c.l.b16 %v697
          %v707 = vunpack.c.h.b16 %v697
          %v708 = vunpack.c.l.b16 %v698
          %v709 = vunpack.c.h.b16 %v698
          %v710 = vunpack.c.l.b16 %v699
          %v711 = vunpack.c.h.b16 %v699
          %v712 = vpack.c.b16 %v706, %v704
          %v713 = vpack.c.b16 %v707, %v705
          %v714 = vpack.c.b16 %v710, %v708
          %v715 = vpack.c.b16 %v711, %v709
          %vm720 = vcmask 261120
          %v722 = vsel %vm720, %v695, 0
          %724 = vmatpush.bf16.msra.mxu0 0
          %725 = vmatpush.bf16.msra.mxu0 0
          %726 = vmatpush.bf16.msra.mxu0 0
          %727 = vmatpush.bf16.msra.mxu0 0
          %728 = vmatpush.bf16.msra.mxu0 0
          %729 = vmatpush.bf16.msra.mxu0 0
          %730 = vmatpush.bf16.msra.mxu0 %v714
          %731 = vmatpush.bf16.msra.mxu0 %v712
          %732 = vmatmul.bf16.gmra.mxu0 %v722
          %v733 = vpop.f32.mrf.mxu0
          %v734 = vadd.f32 0.0, %v733
          %v735 = vpop.f32.mrf.mxu0
          %736 = vdwg.mxu0
          %737 = vmatpush.bf16.msra.mxu0 0
          %738 = vmatpush.bf16.msra.mxu0 0
          %739 = vmatpush.bf16.msra.mxu0 0
          %740 = vmatpush.bf16.msra.mxu0 0
          %741 = vmatpush.bf16.msra.mxu0 0
          %742 = vmatpush.bf16.msra.mxu0 0
          %743 = vmatpush.bf16.msra.mxu0 %v715
          %744 = vmatpush.bf16.msra.mxu0 %v713
          %745 = vmatmul.bf16.gmra.mxu0 %v722
          %v746 = vpop.f32.mrf.mxu0
          %v747 = vadd.f32 0.0, %v746
          %v748 = vpop.f32.mrf.mxu0
          %749 = vdwg.mxu0
          %v750 = vsel %vm642, %v734, -inf
          %v751 = vrot.slane %v750, 4
          %v752 = vmax.f32 %v750, %v751
          %v753 = vrot.slane %v752, 2
          %v754 = vmax.f32 %v752, %v753
          %v755 = vrot.slane %v754, 1
          %v756 = vmax.f32 %v754, %v755
          %v757 = vsel %vm642, %v747, -inf
          %v758 = vrot.slane %v757, 4
          %v759 = vmax.f32 %v757, %v758
          %v760 = vrot.slane %v759, 2
          %v761 = vmax.f32 %v759, %v760
          %v762 = vrot.slane %v761, 1
          %v763 = vmax.f32 %v761, %v762
          %v764 = vsub.f32 %v734, %v756
          %v765 = vsub.f32 %v747, %v763
          %v766 = vmul.f32 %v764, 1.442695
          %v767 = vpow.pop %v766
          %v768 = vmul.f32 %v765, 1.442695
          %v769 = vpow.pop %v768
          %v772 = vrot.slane %v763, 7
          %vm773 = vcmask 1040384
          %v774 = vsel %vm773, %v756, %v772
          %v776 = vlaneseq
          %vm777 = vcmp.ge.s32.totalorder %v776, 0
          %vm778 = vcmp.lt.s32.totalorder %v776, 256
          %vm779 = vmand %vm777, %vm778
          %780 = vst.msk [vmem:[#allocation4] sm:$0x3] %vm779, %v774
          %v781 = vsel %vm642, %v767, 0.0
          %v782 = vrot.slane %v781, 4
          %v783 = vadd.f32 %v781, %v782
          %v784 = vrot.slane %v783, 2
          %v785 = vadd.f32 %v783, %v784
          %v786 = vrot.slane %v785, 1
          %v787 = vadd.f32 %v785, %v786
          %v788 = vsel %vm642, %v769, 0.0
          %v789 = vrot.slane %v788, 4
          %v790 = vadd.f32 %v788, %v789
          %v791 = vrot.slane %v790, 2
          %v792 = vadd.f32 %v790, %v791
          %v793 = vrot.slane %v792, 1
          %v794 = vadd.f32 %v792, %v793
          %v797 = vrot.slane %v794, 7
          %v798 = vsel %vm773, %v787, %v797
          %800 = vst.msk [vmem:[#allocation5] sm:$0x3] %vm779, %v798
          %v801 = vld [vmem:[%s521] sm:$0xf]
          %v802 = vld [vmem:[%s521 + $0x4] sm:$0xf]
          %v803 = vld [vmem:[%s521 + $0x8] sm:$0xf]
          %v804 = vld [vmem:[%s521 + $0xc] sm:$0xf]
          %v805 = vpack.c.bf16 %v767, %v767
          %v806 = vpack.c.bf16 %v769, %v769
          %v811 = vunpack.c.l.b16 %v801
          %v812 = vunpack.c.l.b16 %v802
          %v813 = vunpack.c.l.b16 %v803
          %v814 = vunpack.c.l.b16 %v804
          %v815 = vpack.c.b16 %v812, %v811
          %v816 = vpack.c.b16 %v814, %v813
          %vm817 = vcmask 31744
          %v819 = vsel %vm817, %v815, 0
          %v822 = vsel %vm817, %v816, 0
          %vm824 = vcmask 1041408
          %v826 = vsel %vm824, %v805, 0
          %v829 = vsel %vm824, %v806, 0
          %831 = vmatpush.bf16.msra.mxu0 0
          %832 = vmatpush.bf16.msra.mxu0 0
          %833 = vmatpush.bf16.msra.mxu0 0
          %834 = vmatpush.bf16.msra.mxu0 0
          %835 = vmatpush.bf16.msra.mxu0 0
          %836 = vmatpush.bf16.msra.mxu0 0
          %837 = vmatpush.bf16.msra.mxu0 0
          %838 = vmatpush.bf16.msra.mxu0 %v826
          %839 = vmatmul.bf16.gmra.mxu0 %v819
          %v840 = vpop.f32.mrf.mxu0
          %v841 = vadd.f32 0.0, %v840
          %v842 = vpop.f32.mrf.mxu0
          %v843 = vadd.f32 0.0, %v842
          %844 = vmatmul.bf16.gmra.mxu0 %v822
          %v845 = vpop.f32.mrf.mxu0
          %v846 = vadd.f32 0.0, %v845
          %v847 = vpop.f32.mrf.mxu0
          %v848 = vadd.f32 0.0, %v847
          %849 = vdwg.mxu0
          %850 = vmatpush.bf16.msra.mxu0 0
          %851 = vmatpush.bf16.msra.mxu0 0
          %852 = vmatpush.bf16.msra.mxu0 0
          %853 = vmatpush.bf16.msra.mxu0 0
          %854 = vmatpush.bf16.msra.mxu0 0
          %855 = vmatpush.bf16.msra.mxu0 0
          %856 = vmatpush.bf16.msra.mxu0 0
          %857 = vmatpush.bf16.msra.mxu0 %v829
          %858 = vmatmul.bf16.gmra.mxu0 %v819
          %v859 = vpop.f32.mrf.mxu0
          %v860 = vadd.f32 0.0, %v859
          %v861 = vpop.f32.mrf.mxu0
          %v862 = vadd.f32 0.0, %v861
          %863 = vmatmul.bf16.gmra.mxu0 %v822
          %v864 = vpop.f32.mrf.mxu0
          %v865 = vadd.f32 0.0, %v864
          %v866 = vpop.f32.mrf.mxu0
          %v867 = vadd.f32 0.0, %v866
          %868 = vdwg.mxu0
          %869 = vst [vmem:[#allocation6] sm:$0xff] %v841
          %870 = vst [vmem:[#allocation6 + $0x8] sm:$0xff] %v860
          %871 = vst [vmem:[#allocation6 + $0x10] sm:$0xff] %v843
          %872 = vst [vmem:[#allocation6 + $0x18] sm:$0xff] %v862
          %873 = vst [vmem:[#allocation6 + $0x20] sm:$0xff] %v846
          %874 = vst [vmem:[#allocation6 + $0x28] sm:$0xff] %v865
          %875 = vst [vmem:[#allocation6 + $0x30] sm:$0xff] %v848
          %876 = vst [vmem:[#allocation6 + $0x38] sm:$0xff] %v867
        $region64: #{tpu_custom_call.1} parent=55 // pred_fallthru
          _
        %v877 = vld [vmem:[%s493] sm:$0xff]
        %v878 = vld [vmem:[%s493 + $0x8] sm:$0xff]
        %v879 = vmul.f32 %v877, %v877
        %v880 = vmul.f32 %v878, %v878
        %v881 = vrot.slane %v879, 4
        %v882 = vadd.f32 %v879, %v881
        %v883 = vrot.slane %v882, 2
        %v884 = vadd.f32 %v882, %v883
        %v885 = vrot.slane %v884, 1
        %v886 = vadd.f32 %v884, %v885
        %v887 = vrot.slane %v880, 4
        %v888 = vadd.f32 %v880, %v887
        %v889 = vrot.slane %v888, 2
        %v890 = vadd.f32 %v888, %v889
        %v891 = vrot.slane %v890, 1
        %v892 = vadd.f32 %v890, %v891
        %v893 = vrsqrt.pop %v886
        %v894 = vmul.f32 %v893, %v886
        %v895 = vmul.f32 %v894, %v893
        %v896 = vmul.f32 0.5, %v895
        %v897 = vsub.f32 1.5, %v896
        %v898 = vmul.f32 %v893, %v897
        %v899 = vmul.f32 %v886, %v898
        %vm900 = vcmp.eq.f32.partialorder %v886, inf
        %v901 = vsel %vm900, %v886, %v899
        %vm902 = vcmp.eq.f32.partialorder %v886, 0.0
        %v903 = vand.u32 %v886, 2147483648
        %v904 = vsel %vm902, %v903, %v901
        %v905 = vrsqrt.pop %v892
        %v906 = vmul.f32 %v905, %v892
        %v907 = vmul.f32 %v906, %v905
        %v908 = vmul.f32 0.5, %v907
        %v909 = vsub.f32 1.5, %v908
        %v910 = vmul.f32 %v905, %v909
        %v911 = vmul.f32 %v892, %v910
        %vm912 = vcmp.eq.f32.partialorder %v892, inf
        %v913 = vsel %vm912, %v892, %v911
        %vm914 = vcmp.eq.f32.partialorder %v892, 0.0
        %v915 = vand.u32 %v892, 2147483648
        %v916 = vsel %vm914, %v915, %v913
        %v917 = vmax.f32 %v904, 1e-12
        %v918 = vmax.f32 %v916, 1e-12
        %v919 = vrcp.pop %v917
        %v920 = vmul.f32 %v917, %v919
        %v921 = vsub.f32 1.0, %v920
        %v922 = vmul.f32 %v919, %v921
        %v923 = vadd.f32 %v919, %v922
        %vm924 = vweird.f32 %v917
        %vm925 = vweird.f32 %v919
        %vm926 = vmor %vm924, %vm925
        %v927 = vsel %vm926, %v919, %v923
        %v928 = vand.u32 2147483647, %v917
        %vm929 = vcmp.eq.f32.partialorder %v928, 8.507059e+37
        %v930 = vand.u32 %v917, 2147483648
        %v931 = vor.u32 1.1754944e-38, %v930
        %v932 = vsel %vm929, %v931, %v927
        %v933 = vmul.f32 1.0, %v932
        %v934 = vrcp.pop %v918
        %v935 = vmul.f32 %v918, %v934
        %v936 = vsub.f32 1.0, %v935
        %v937 = vmul.f32 %v934, %v936
        %v938 = vadd.f32 %v934, %v937
        %vm939 = vweird.f32 %v918
        %vm940 = vweird.f32 %v934
        %vm941 = vmor %vm939, %vm940
        %v942 = vsel %vm941, %v934, %v938
        %v943 = vand.u32 2147483647, %v918
        %vm944 = vcmp.eq.f32.partialorder %v943, 8.507059e+37
        %v945 = vand.u32 %v918, 2147483648
        %v946 = vor.u32 1.1754944e-38, %v945
        %v947 = vsel %vm944, %v946, %v942
        %v948 = vmul.f32 1.0, %v947
        %v949 = vmul.f32 %v877, %v933
        %v950 = vmul.f32 %v878, %v948
        %v951 = vpack.c.bf16 %v949, %v949
        %v952 = vpack.c.bf16 %v950, %v950
        %v953 = vld [vmem:[%s508] sm:$0xf]
        %v954 = vld [vmem:[%s508 + $0x4] sm:$0xf]
        %v955 = vld [vmem:[%s508 + $0x8] sm:$0xf]
        %v956 = vld [vmem:[%s508 + $0xc] sm:$0xf]
        %v961 = vunpack.c.l.b16 %v953
        %v962 = vunpack.c.l.b16 %v954
        %v963 = vunpack.c.l.b16 %v955
        %v964 = vunpack.c.l.b16 %v956
        %v965 = vpack.c.b16 %v962, %v961
        %v966 = vpack.c.b16 %v964, %v963
        %vm967 = vcmask 64512
        %v969 = vsel %vm967, %v965, 0
        %v972 = vsel %vm967, %v966, 0
        %vm974 = vcmask 1043456
        %v976 = vsel %vm974, %v951, 0
        %v979 = vsel %vm974, %v952, 0
        %981 = vmatpush.bf16.msra.mxu0 0
        %982 = vmatpush.bf16.msra.mxu0 0
        %983 = vmatpush.bf16.msra.mxu0 0
        %984 = vmatpush.bf16.msra.mxu0 0
        %985 = vmatpush.bf16.msra.mxu0 0
        %986 = vmatpush.bf16.msra.mxu0 0
        %987 = vmatpush.bf16.msra.mxu0 0
        %988 = vmatpush.bf16.msra.mxu0 %v976
        %989 = vmatmul.bf16.gmra.mxu0 %v969
        %v990 = vpop.f32.mrf.mxu0
        %v991 = vadd.f32 0.0, %v990
        %v992 = vpop.f32.mrf.mxu0
        %v993 = vadd.f32 0.0, %v992
        %994 = vmatmul.bf16.gmra.mxu0 %v972
        %v995 = vpop.f32.mrf.mxu0
        %v996 = vadd.f32 0.0, %v995
        %v997 = vpop.f32.mrf.mxu0
        %v998 = vadd.f32 0.0, %v997
        %999 = vdwg.mxu0
        %1000 = vmatpush.bf16.msra.mxu0 0
        %1001 = vmatpush.bf16.msra.mxu0 0
        %1002 = vmatpush.bf16.msra.mxu0 0
        %1003 = vmatpush.bf16.msra.mxu0 0
        %1004 = vmatpush.bf16.msra.mxu0 0
        %1005 = vmatpush.bf16.msra.mxu0 0
        %1006 = vmatpush.bf16.msra.mxu0 0
        %1007 = vmatpush.bf16.msra.mxu0 %v979
        %1008 = vmatmul.bf16.gmra.mxu0 %v969
        %v1009 = vpop.f32.mrf.mxu0
        %v1010 = vadd.f32 0.0, %v1009
        %v1011 = vpop.f32.mrf.mxu0
        %v1012 = vadd.f32 0.0, %v1011
        %1013 = vmatmul.bf16.gmra.mxu0 %v972
        %v1014 = vpop.f32.mrf.mxu0
        %v1015 = vadd.f32 0.0, %v1014
        %v1016 = vpop.f32.mrf.mxu0
        %v1017 = vadd.f32 0.0, %v1016
        %1018 = vdwg.mxu0
        %1019 = vxpose.xlu0.b32.start [1/16] %v949, 128
        %1020 = vxpose.xlu0.b32.cont [2/16] 0.0, 128
        %1021 = vxpose.xlu0.b32.cont [3/16] 0.0, 128
        %1022 = vxpose.xlu0.b32.cont [4/16] 0.0, 128
        %1023 = vxpose.xlu0.b32.cont [5/16] 0.0, 128
        %1024 = vxpose.xlu0.b32.cont [6/16] 0.0, 128
        %1025 = vxpose.xlu0.b32.cont [7/16] 0.0, 128
        %1026 = vxpose.xlu0.b32.cont [8/16] 0.0, 128
        %1027 = vxpose.xlu0.b32.cont [9/16] 0.0, 128
        %1028 = vxpose.xlu0.b32.cont [10/16] 0.0, 128
        %1029 = vxpose.xlu0.b32.cont [11/16] 0.0, 128
        %1030 = vxpose.xlu0.b32.cont [12/16] 0.0, 128
        %1031 = vxpose.xlu0.b32.cont [13/16] 0.0, 128
        %1032 = vxpose.xlu0.b32.cont [14/16] 0.0, 128
        %1033 = vxpose.xlu0.b32.cont [15/16] 0.0, 128
        %1034 = vxpose.xlu0.b32.end [16/16] 0.0, 128
        %v1035 = vpop.trf.xlu0
        %v1036 = vpop.trf.xlu0
        %v1037 = vpop.trf.xlu0
        %v1038 = vpop.trf.xlu0
        %v1039 = vpop.trf.xlu0
        %v1040 = vpop.trf.xlu0
        %v1041 = vpop.trf.xlu0
        %v1042 = vpop.trf.xlu0
        %v1043 = vpop.trf.xlu0
        %v1044 = vpop.trf.xlu0
        %v1045 = vpop.trf.xlu0
        %v1046 = vpop.trf.xlu0
        %v1047 = vpop.trf.xlu0
        %v1048 = vpop.trf.xlu0
        %v1049 = vpop.trf.xlu0
        %v1050 = vpop.trf.xlu0
        %1051 = vxpose.xlu0.b32.start [1/16] %v950, 128
        %1052 = vxpose.xlu0.b32.cont [2/16] 0.0, 128
        %1053 = vxpose.xlu0.b32.cont [3/16] 0.0, 128
        %1054 = vxpose.xlu0.b32.cont [4/16] 0.0, 128
        %1055 = vxpose.xlu0.b32.cont [5/16] 0.0, 128
        %1056 = vxpose.xlu0.b32.cont [6/16] 0.0, 128
        %1057 = vxpose.xlu0.b32.cont [7/16] 0.0, 128
        %1058 = vxpose.xlu0.b32.cont [8/16] 0.0, 128
        %1059 = vxpose.xlu0.b32.cont [9/16] 0.0, 128
        %1060 = vxpose.xlu0.b32.cont [10/16] 0.0, 128
        %1061 = vxpose.xlu0.b32.cont [11/16] 0.0, 128
        %1062 = vxpose.xlu0.b32.cont [12/16] 0.0, 128
        %1063 = vxpose.xlu0.b32.cont [13/16] 0.0, 128
        %1064 = vxpose.xlu0.b32.cont [14/16] 0.0, 128
        %1065 = vxpose.xlu0.b32.cont [15/16] 0.0, 128
        %1066 = vxpose.xlu0.b32.end [16/16] 0.0, 128
        %v1067 = vpop.trf.xlu0
        %v1068 = vpop.trf.xlu0
        %v1069 = vpop.trf.xlu0
        %v1070 = vpop.trf.xlu0
        %v1071 = vpop.trf.xlu0
        %v1072 = vpop.trf.xlu0
        %v1073 = vpop.trf.xlu0
        %v1074 = vpop.trf.xlu0
        %v1075 = vpop.trf.xlu0
        %v1076 = vpop.trf.xlu0
        %v1077 = vpop.trf.xlu0
        %v1078 = vpop.trf.xlu0
        %v1079 = vpop.trf.xlu0
        %v1080 = vpop.trf.xlu0
        %v1081 = vpop.trf.xlu0
        %v1082 = vpop.trf.xlu0
        %v1083 = vpack.c.bf16 %v1036, %v1035
        %v1084 = vpack.c.bf16 %v1038, %v1037
        %v1085 = vpack.c.bf16 %v1040, %v1039
        %v1086 = vpack.c.bf16 %v1042, %v1041
        %v1087 = vpack.c.bf16 %v1044, %v1043
        %v1088 = vpack.c.bf16 %v1046, %v1045
        %v1089 = vpack.c.bf16 %v1048, %v1047
        %v1090 = vpack.c.bf16 %v1050, %v1049
        %v1091 = vpack.c.bf16 %v1068, %v1067
        %v1092 = vpack.c.bf16 %v1070, %v1069
        %v1093 = vpack.c.bf16 %v1072, %v1071
        %v1094 = vpack.c.bf16 %v1074, %v1073
        %v1095 = vpack.c.bf16 %v1076, %v1075
        %v1096 = vpack.c.bf16 %v1078, %v1077
        %v1097 = vpack.c.bf16 %v1080, %v1079
        %v1098 = vpack.c.bf16 %v1082, %v1081
        %v1099 = vld [vmem:[%s503] sm:$0xf]
        %v1101 = vsel %vm967, %v1083, 0
        %v1104 = vsel %vm967, %v1084, 0
        %v1107 = vsel %vm967, %v1085, 0
        %v1110 = vsel %vm967, %v1086, 0
        %v1113 = vsel %vm967, %v1087, 0
        %v1116 = vsel %vm967, %v1088, 0
        %v1119 = vsel %vm967, %v1089, 0
        %v1122 = vsel %vm967, %v1090, 0
        %v1125 = vsel %vm967, %v1091, 0
        %v1128 = vsel %vm967, %v1092, 0
        %v1131 = vsel %vm967, %v1093, 0
        %v1134 = vsel %vm967, %v1094, 0
        %v1137 = vsel %vm967, %v1095, 0
        %v1140 = vsel %vm967, %v1096, 0
        %v1143 = vsel %vm967, %v1097, 0
        %v1146 = vsel %vm967, %v1098, 0
        %v1149 = vsel %vm974, %v1099, 0
        %1151 = vmatpush.bf16.msra.mxu0 0
        %1152 = vmatpush.bf16.msra.mxu0 0
        %1153 = vmatpush.bf16.msra.mxu0 0
        %1154 = vmatpush.bf16.msra.mxu0 0
        %1155 = vmatpush.bf16.msra.mxu0 0
        %1156 = vmatpush.bf16.msra.mxu0 0
        %1157 = vmatpush.bf16.msra.mxu0 0
        %1158 = vmatpush.bf16.msra.mxu0 %v1149
        %1159 = vmatmul.bf16.gmra.mxu0 %v1101
        %v1160 = vpop.f32.mrf.mxu0
        %v1161 = vadd.f32 0.0, %v1160
        %v1162 = vpop.f32.mrf.mxu0
        %v1163 = vadd.f32 0.0, %v1162
        %1164 = vmatmul.bf16.gmra.mxu0 %v1104
        %v1165 = vpop.f32.mrf.mxu0
        %v1166 = vadd.f32 0.0, %v1165
        %v1167 = vpop.f32.mrf.mxu0
        %v1168 = vadd.f32 0.0, %v1167
        %1169 = vmatmul.bf16.gmra.mxu0 %v1107
        %v1170 = vpop.f32.mrf.mxu0
        %v1171 = vadd.f32 0.0, %v1170
        %v1172 = vpop.f32.mrf.mxu0
        %v1173 = vadd.f32 0.0, %v1172
        %1174 = vmatmul.bf16.gmra.mxu0 %v1110
        %v1175 = vpop.f32.mrf.mxu0
        %v1176 = vadd.f32 0.0, %v1175
        %v1177 = vpop.f32.mrf.mxu0
        %v1178 = vadd.f32 0.0, %v1177
        %1179 = vmatmul.bf16.gmra.mxu0 %v1113
        %v1180 = vpop.f32.mrf.mxu0
        %v1181 = vadd.f32 0.0, %v1180
        %v1182 = vpop.f32.mrf.mxu0
        %v1183 = vadd.f32 0.0, %v1182
        %1184 = vmatmul.bf16.gmra.mxu0 %v1116
        %v1185 = vpop.f32.mrf.mxu0
        %v1186 = vadd.f32 0.0, %v1185
        %v1187 = vpop.f32.mrf.mxu0
        %v1188 = vadd.f32 0.0, %v1187
        %1189 = vmatmul.bf16.gmra.mxu0 %v1119
        %v1190 = vpop.f32.mrf.mxu0
        %v1191 = vadd.f32 0.0, %v1190
        %v1192 = vpop.f32.mrf.mxu0
        %v1193 = vadd.f32 0.0, %v1192
        %1194 = vmatmul.bf16.gmra.mxu0 %v1122
        %v1195 = vpop.f32.mrf.mxu0
        %v1196 = vadd.f32 0.0, %v1195
        %v1197 = vpop.f32.mrf.mxu0
        %v1198 = vadd.f32 0.0, %v1197
        %1199 = vmatmul.bf16.gmra.mxu0 %v1125
        %v1200 = vpop.f32.mrf.mxu0
        %v1201 = vadd.f32 0.0, %v1200
        %v1202 = vpop.f32.mrf.mxu0
        %v1203 = vadd.f32 0.0, %v1202
        %1204 = vmatmul.bf16.gmra.mxu0 %v1128
        %v1205 = vpop.f32.mrf.mxu0
        %v1206 = vadd.f32 0.0, %v1205
        %v1207 = vpop.f32.mrf.mxu0
        %v1208 = vadd.f32 0.0, %v1207
        %1209 = vmatmul.bf16.gmra.mxu0 %v1131
        %v1210 = vpop.f32.mrf.mxu0
        %v1211 = vadd.f32 0.0, %v1210
        %v1212 = vpop.f32.mrf.mxu0
        %v1213 = vadd.f32 0.0, %v1212
        %1214 = vmatmul.bf16.gmra.mxu0 %v1134
        %v1215 = vpop.f32.mrf.mxu0
        %v1216 = vadd.f32 0.0, %v1215
        %v1217 = vpop.f32.mrf.mxu0
        %v1218 = vadd.f32 0.0, %v1217
        %1219 = vmatmul.bf16.gmra.mxu0 %v1137
        %v1220 = vpop.f32.mrf.mxu0
        %v1221 = vadd.f32 0.0, %v1220
        %v1222 = vpop.f32.mrf.mxu0
        %v1223 = vadd.f32 0.0, %v1222
        %1224 = vmatmul.bf16.gmra.mxu0 %v1140
        %v1225 = vpop.f32.mrf.mxu0
        %v1226 = vadd.f32 0.0, %v1225
        %v1227 = vpop.f32.mrf.mxu0
        %v1228 = vadd.f32 0.0, %v1227
        %1229 = vmatmul.bf16.gmra.mxu0 %v1143
        %v1230 = vpop.f32.mrf.mxu0
        %v1231 = vadd.f32 0.0, %v1230
        %v1232 = vpop.f32.mrf.mxu0
        %v1233 = vadd.f32 0.0, %v1232
        %1234 = vmatmul.bf16.gmra.mxu0 %v1146
        %v1235 = vpop.f32.mrf.mxu0
        %v1236 = vadd.f32 0.0, %v1235
        %v1237 = vpop.f32.mrf.mxu0
        %v1238 = vadd.f32 0.0, %v1237
        %1239 = vdwg.mxu0
        %v1240 = vpack.c.bf16 %v1163, %v1161
        %v1241 = vpack.c.bf16 %v1168, %v1166
        %v1242 = vpack.c.bf16 %v1173, %v1171
        %v1243 = vpack.c.bf16 %v1178, %v1176
        %v1244 = vpack.c.bf16 %v1183, %v1181
        %v1245 = vpack.c.bf16 %v1188, %v1186
        %v1246 = vpack.c.bf16 %v1193, %v1191
        %v1247 = vpack.c.bf16 %v1198, %v1196
        %v1248 = vpack.c.bf16 %v1203, %v1201
        %v1249 = vpack.c.bf16 %v1208, %v1206
        %v1250 = vpack.c.bf16 %v1213, %v1211
        %v1251 = vpack.c.bf16 %v1218, %v1216
        %v1252 = vpack.c.bf16 %v1223, %v1221
        %v1253 = vpack.c.bf16 %v1228, %v1226
        %v1254 = vpack.c.bf16 %v1233, %v1231
        %v1255 = vpack.c.bf16 %v1238, %v1236
        %v1256 = vld [vmem:[#allocation3] sm:$0xff]
        %v1257 = vld [vmem:[#allocation3 + $0x8] sm:$0xff]
        %v1258 = vld [vmem:[#allocation3 + $0x10] sm:$0xff]
        %v1259 = vld [vmem:[#allocation3 + $0x18] sm:$0xff]
        %v1264 = vunpack.c.l.b16 %v1256
        %v1265 = vunpack.c.h.b16 %v1256
        %v1266 = vunpack.c.l.b16 %v1257
        %v1267 = vunpack.c.h.b16 %v1257
        %v1268 = vunpack.c.l.b16 %v1258
        %v1269 = vunpack.c.h.b16 %v1258
        %v1270 = vunpack.c.l.b16 %v1259
        %v1271 = vunpack.c.h.b16 %v1259
        %v1272 = vpack.c.b16 %v1266, %v1264
        %v1273 = vpack.c.b16 %v1267, %v1265
        %v1274 = vpack.c.b16 %v1270, %v1268
        %v1275 = vpack.c.b16 %v1271, %v1269
        %vm1280 = vcmask 261120
        %v1282 = vsel %vm1280, %v1240, 0
        %v1285 = vsel %vm1280, %v1241, 0
        %v1288 = vsel %vm1280, %v1242, 0
        %v1291 = vsel %vm1280, %v1243, 0
        %v1294 = vsel %vm1280, %v1244, 0
        %v1297 = vsel %vm1280, %v1245, 0
        %v1300 = vsel %vm1280, %v1246, 0
        %v1303 = vsel %vm1280, %v1247, 0
        %v1306 = vsel %vm1280, %v1248, 0
        %v1309 = vsel %vm1280, %v1249, 0
        %v1312 = vsel %vm1280, %v1250, 0
        %v1315 = vsel %vm1280, %v1251, 0
        %v1318 = vsel %vm1280, %v1252, 0
        %v1321 = vsel %vm1280, %v1253, 0
        %v1324 = vsel %vm1280, %v1254, 0
        %v1327 = vsel %vm1280, %v1255, 0
        %1329 = vmatpush.bf16.msra.mxu0 0
        %1330 = vmatpush.bf16.msra.mxu0 0
        %1331 = vmatpush.bf16.msra.mxu0 0
        %1332 = vmatpush.bf16.msra.mxu0 0
        %1333 = vmatpush.bf16.msra.mxu0 0
        %1334 = vmatpush.bf16.msra.mxu0 0
        %1335 = vmatpush.bf16.msra.mxu0 %v1274
        %1336 = vmatpush.bf16.msra.mxu0 %v1272
        %1337 = vmatmul.bf16.gmra.mxu0 %v1282
        %v1338 = vpop.f32.mrf.mxu0
        %v1339 = vadd.f32 0.0, %v1338
        %v1340 = vpop.f32.mrf.mxu0
        %v1341 = vadd.f32 0.0, %v1340
        %1342 = vmatmul.bf16.gmra.mxu0 %v1285
        %v1343 = vpop.f32.mrf.mxu0
        %v1344 = vadd.f32 0.0, %v1343
        %v1345 = vpop.f32.mrf.mxu0
        %v1346 = vadd.f32 0.0, %v1345
        %1347 = vmatmul.bf16.gmra.mxu0 %v1288
        %v1348 = vpop.f32.mrf.mxu0
        %v1349 = vadd.f32 0.0, %v1348
        %v1350 = vpop.f32.mrf.mxu0
        %v1351 = vadd.f32 0.0, %v1350
        %1352 = vmatmul.bf16.gmra.mxu0 %v1291
        %v1353 = vpop.f32.mrf.mxu0
        %v1354 = vadd.f32 0.0, %v1353
        %v1355 = vpop.f32.mrf.mxu0
        %v1356 = vadd.f32 0.0, %v1355
        %1357 = vmatmul.bf16.gmra.mxu0 %v1294
        %v1358 = vpop.f32.mrf.mxu0
        %v1359 = vadd.f32 0.0, %v1358
        %v1360 = vpop.f32.mrf.mxu0
        %v1361 = vadd.f32 0.0, %v1360
        %1362 = vmatmul.bf16.gmra.mxu0 %v1297
        %v1363 = vpop.f32.mrf.mxu0
        %v1364 = vadd.f32 0.0, %v1363
        %v1365 = vpop.f32.mrf.mxu0
        %v1366 = vadd.f32 0.0, %v1365
        %1367 = vmatmul.bf16.gmra.mxu0 %v1300
        %v1368 = vpop.f32.mrf.mxu0
        %v1369 = vadd.f32 0.0, %v1368
        %v1370 = vpop.f32.mrf.mxu0
        %v1371 = vadd.f32 0.0, %v1370
        %1372 = vmatmul.bf16.gmra.mxu0 %v1303
        %v1373 = vpop.f32.mrf.mxu0
        %v1374 = vadd.f32 0.0, %v1373
        %v1375 = vpop.f32.mrf.mxu0
        %v1376 = vadd.f32 0.0, %v1375
        %1377 = vmatmul.bf16.gmra.mxu0 %v1306
        %v1378 = vpop.f32.mrf.mxu0
        %v1379 = vadd.f32 0.0, %v1378
        %v1380 = vpop.f32.mrf.mxu0
        %v1381 = vadd.f32 0.0, %v1380
        %1382 = vmatmul.bf16.gmra.mxu0 %v1309
        %v1383 = vpop.f32.mrf.mxu0
        %v1384 = vadd.f32 0.0, %v1383
        %v1385 = vpop.f32.mrf.mxu0
        %v1386 = vadd.f32 0.0, %v1385
        %1387 = vmatmul.bf16.gmra.mxu0 %v1312
        %v1388 = vpop.f32.mrf.mxu0
        %v1389 = vadd.f32 0.0, %v1388
        %v1390 = vpop.f32.mrf.mxu0
        %v1391 = vadd.f32 0.0, %v1390
        %1392 = vmatmul.bf16.gmra.mxu0 %v1315
        %v1393 = vpop.f32.mrf.mxu0
        %v1394 = vadd.f32 0.0, %v1393
        %v1395 = vpop.f32.mrf.mxu0
        %v1396 = vadd.f32 0.0, %v1395
        %1397 = vmatmul.bf16.gmra.mxu0 %v1318
        %v1398 = vpop.f32.mrf.mxu0
        %v1399 = vadd.f32 0.0, %v1398
        %v1400 = vpop.f32.mrf.mxu0
        %v1401 = vadd.f32 0.0, %v1400
        %1402 = vmatmul.bf16.gmra.mxu0 %v1321
        %v1403 = vpop.f32.mrf.mxu0
        %v1404 = vadd.f32 0.0, %v1403
        %v1405 = vpop.f32.mrf.mxu0
        %v1406 = vadd.f32 0.0, %v1405
        %1407 = vmatmul.bf16.gmra.mxu0 %v1324
        %v1408 = vpop.f32.mrf.mxu0
        %v1409 = vadd.f32 0.0, %v1408
        %v1410 = vpop.f32.mrf.mxu0
        %v1411 = vadd.f32 0.0, %v1410
        %1412 = vmatmul.bf16.gmra.mxu0 %v1327
        %v1413 = vpop.f32.mrf.mxu0
        %v1414 = vadd.f32 0.0, %v1413
        %v1415 = vpop.f32.mrf.mxu0
        %v1416 = vadd.f32 0.0, %v1415
        %1417 = vdwg.mxu0
        %1418 = vmatpush.bf16.msra.mxu0 0
        %1419 = vmatpush.bf16.msra.mxu0 0
        %1420 = vmatpush.bf16.msra.mxu0 0
        %1421 = vmatpush.bf16.msra.mxu0 0
        %1422 = vmatpush.bf16.msra.mxu0 0
        %1423 = vmatpush.bf16.msra.mxu0 0
        %1424 = vmatpush.bf16.msra.mxu0 %v1275
        %1425 = vmatpush.bf16.msra.mxu0 %v1273
        %1426 = vmatmul.bf16.gmra.mxu0 %v1282
        %v1427 = vpop.f32.mrf.mxu0
        %v1428 = vadd.f32 0.0, %v1427
        %v1429 = vpop.f32.mrf.mxu0
        %v1430 = vadd.f32 0.0, %v1429
        %1431 = vmatmul.bf16.gmra.mxu0 %v1285
        %v1432 = vpop.f32.mrf.mxu0
        %v1433 = vadd.f32 0.0, %v1432
        %v1434 = vpop.f32.mrf.mxu0
        %v1435 = vadd.f32 0.0, %v1434
        %1436 = vmatmul.bf16.gmra.mxu0 %v1288
        %v1437 = vpop.f32.mrf.mxu0
        %v1438 = vadd.f32 0.0, %v1437
        %v1439 = vpop.f32.mrf.mxu0
        %v1440 = vadd.f32 0.0, %v1439
        %1441 = vmatmul.bf16.gmra.mxu0 %v1291
        %v1442 = vpop.f32.mrf.mxu0
        %v1443 = vadd.f32 0.0, %v1442
        %v1444 = vpop.f32.mrf.mxu0
        %v1445 = vadd.f32 0.0, %v1444
        %1446 = vmatmul.bf16.gmra.mxu0 %v1294
        %v1447 = vpop.f32.mrf.mxu0
        %v1448 = vadd.f32 0.0, %v1447
        %v1449 = vpop.f32.mrf.mxu0
        %v1450 = vadd.f32 0.0, %v1449
        %1451 = vmatmul.bf16.gmra.mxu0 %v1297
        %v1452 = vpop.f32.mrf.mxu0
        %v1453 = vadd.f32 0.0, %v1452
        %v1454 = vpop.f32.mrf.mxu0
        %v1455 = vadd.f32 0.0, %v1454
        %1456 = vmatmul.bf16.gmra.mxu0 %v1300
        %v1457 = vpop.f32.mrf.mxu0
        %v1458 = vadd.f32 0.0, %v1457
        %v1459 = vpop.f32.mrf.mxu0
        %v1460 = vadd.f32 0.0, %v1459
        %1461 = vmatmul.bf16.gmra.mxu0 %v1303
        %v1462 = vpop.f32.mrf.mxu0
        %v1463 = vadd.f32 0.0, %v1462
        %v1464 = vpop.f32.mrf.mxu0
        %v1465 = vadd.f32 0.0, %v1464
        %1466 = vmatmul.bf16.gmra.mxu0 %v1306
        %v1467 = vpop.f32.mrf.mxu0
        %v1468 = vadd.f32 0.0, %v1467
        %v1469 = vpop.f32.mrf.mxu0
        %v1470 = vadd.f32 0.0, %v1469
        %1471 = vmatmul.bf16.gmra.mxu0 %v1309
        %v1472 = vpop.f32.mrf.mxu0
        %v1473 = vadd.f32 0.0, %v1472
        %v1474 = vpop.f32.mrf.mxu0
        %v1475 = vadd.f32 0.0, %v1474
        %1476 = vmatmul.bf16.gmra.mxu0 %v1312
        %v1477 = vpop.f32.mrf.mxu0
        %v1478 = vadd.f32 0.0, %v1477
        %v1479 = vpop.f32.mrf.mxu0
        %v1480 = vadd.f32 0.0, %v1479
        %1481 = vmatmul.bf16.gmra.mxu0 %v1315
        %v1482 = vpop.f32.mrf.mxu0
        %v1483 = vadd.f32 0.0, %v1482
        %v1484 = vpop.f32.mrf.mxu0
        %v1485 = vadd.f32 0.0, %v1484
        %1486 = vmatmul.bf16.gmra.mxu0 %v1318
        %v1487 = vpop.f32.mrf.mxu0
        %v1488 = vadd.f32 0.0, %v1487
        %v1489 = vpop.f32.mrf.mxu0
        %v1490 = vadd.f32 0.0, %v1489
        %1491 = vmatmul.bf16.gmra.mxu0 %v1321
        %v1492 = vpop.f32.mrf.mxu0
        %v1493 = vadd.f32 0.0, %v1492
        %v1494 = vpop.f32.mrf.mxu0
        %v1495 = vadd.f32 0.0, %v1494
        %1496 = vmatmul.bf16.gmra.mxu0 %v1324
        %v1497 = vpop.f32.mrf.mxu0
        %v1498 = vadd.f32 0.0, %v1497
        %v1499 = vpop.f32.mrf.mxu0
        %v1500 = vadd.f32 0.0, %v1499
        %1501 = vmatmul.bf16.gmra.mxu0 %v1327
        %v1502 = vpop.f32.mrf.mxu0
        %v1503 = vadd.f32 0.0, %v1502
        %v1504 = vpop.f32.mrf.mxu0
        %v1505 = vadd.f32 0.0, %v1504
        %1506 = vdwg.mxu0
        %v1507 = vld [vmem:[#allocation4] sm:$0x3]
        %v1508 = vmax.f32 %v1339, %v1344
        %v1509 = vmax.f32 %v1341, %v1346
        %v1510 = vmax.f32 %v1508, %v1349
        %v1511 = vmax.f32 %v1509, %v1351
        %v1512 = vmax.f32 %v1510, %v1354
        %v1513 = vmax.f32 %v1511, %v1356
        %v1514 = vmax.f32 %v1512, %v1359
        %v1515 = vmax.f32 %v1513, %v1361
        %v1516 = vmax.f32 %v1514, %v1364
        %v1517 = vmax.f32 %v1515, %v1366
        %v1518 = vmax.f32 %v1516, %v1369
        %v1519 = vmax.f32 %v1517, %v1371
        %v1520 = vmax.f32 %v1518, %v1374
        %v1521 = vmax.f32 %v1519, %v1376
        %v1522 = vmax.f32 %v1520, %v1379
        %v1523 = vmax.f32 %v1521, %v1381
        %v1524 = vmax.f32 %v1522, %v1384
        %v1525 = vmax.f32 %v1523, %v1386
        %v1526 = vmax.f32 %v1524, %v1389
        %v1527 = vmax.f32 %v1525, %v1391
        %v1528 = vmax.f32 %v1526, %v1394
        %v1529 = vmax.f32 %v1527, %v1396
        %v1530 = vmax.f32 %v1528, %v1399
        %v1531 = vmax.f32 %v1529, %v1401
        %v1532 = vmax.f32 %v1530, %v1404
        %v1533 = vmax.f32 %v1531, %v1406
        %v1534 = vmax.f32 %v1532, %v1409
        %v1535 = vmax.f32 %v1533, %v1411
        %v1536 = vmax.f32 %v1534, %v1414
        %v1537 = vmax.f32 %v1535, %v1416
        %v1538 = vmax.f32 %v1536, %v1537
        %v1539 = vrot.slane %v1538, 4
        %v1540 = vmax.f32 %v1538, %v1539
        %v1541 = vrot.slane %v1540, 2
        %v1542 = vmax.f32 %v1540, %v1541
        %v1543 = vrot.slane %v1542, 1
        %v1544 = vmax.f32 %v1542, %v1543
        %v1545 = vmax.f32 %v1428, %v1433
        %v1546 = vmax.f32 %v1430, %v1435
        %v1547 = vmax.f32 %v1545, %v1438
        %v1548 = vmax.f32 %v1546, %v1440
        %v1549 = vmax.f32 %v1547, %v1443
        %v1550 = vmax.f32 %v1548, %v1445
        %v1551 = vmax.f32 %v1549, %v1448
        %v1552 = vmax.f32 %v1550, %v1450
        %v1553 = vmax.f32 %v1551, %v1453
        %v1554 = vmax.f32 %v1552, %v1455
        %v1555 = vmax.f32 %v1553, %v1458
        %v1556 = vmax.f32 %v1554, %v1460
        %v1557 = vmax.f32 %v1555, %v1463
        %v1558 = vmax.f32 %v1556, %v1465
        %v1559 = vmax.f32 %v1557, %v1468
        %v1560 = vmax.f32 %v1558, %v1470
        %v1561 = vmax.f32 %v1559, %v1473
        %v1562 = vmax.f32 %v1560, %v1475
        %v1563 = vmax.f32 %v1561, %v1478
        %v1564 = vmax.f32 %v1562, %v1480
        %v1565 = vmax.f32 %v1563, %v1483
        %v1566 = vmax.f32 %v1564, %v1485
        %v1567 = vmax.f32 %v1565, %v1488
        %v1568 = vmax.f32 %v1566, %v1490
        %v1569 = vmax.f32 %v1567, %v1493
        %v1570 = vmax.f32 %v1568, %v1495
        %v1571 = vmax.f32 %v1569, %v1498
        %v1572 = vmax.f32 %v1570, %v1500
        %v1573 = vmax.f32 %v1571, %v1503
        %v1574 = vmax.f32 %v1572, %v1505
        %v1575 = vmax.f32 %v1573, %v1574
        %v1576 = vrot.slane %v1575, 4
        %v1577 = vmax.f32 %v1575, %v1576
        %v1578 = vrot.slane %v1577, 2
        %v1579 = vmax.f32 %v1577, %v1578
        %v1580 = vrot.slane %v1579, 1
        %v1581 = vmax.f32 %v1579, %v1580
        %v1584 = vrot.slane %v1581, 7
        %vm1585 = vcmask 1040384
        %v1586 = vsel %vm1585, %v1544, %v1584
        %v1588 = vmax.f32 %v1507, %v1586
        %v1589 = vsub.f32 %v1507, %v1588
        %v1590 = vmul.f32 %v1589, 1.442695
        %v1591 = vpow.pop %v1590
        %v1593 = vperm.slane %v1588, 0
        %v1594 = vperm.slane %v1588, 1
        %v1597 = vsub.f32 %v1339, %v1593
        %v1598 = vsub.f32 %v1428, %v1594
        %v1599 = vsub.f32 %v1341, %v1593
        %v1600 = vsub.f32 %v1430, %v1594
        %v1601 = vsub.f32 %v1344, %v1593
        %v1602 = vsub.f32 %v1433, %v1594
        %v1603 = vsub.f32 %v1346, %v1593
        %v1604 = vsub.f32 %v1435, %v1594
        %v1605 = vsub.f32 %v1349, %v1593
        %v1606 = vsub.f32 %v1438, %v1594
        %v1607 = vsub.f32 %v1351, %v1593
        %v1608 = vsub.f32 %v1440, %v1594
        %v1609 = vsub.f32 %v1354, %v1593
        %v1610 = vsub.f32 %v1443, %v1594
        %v1611 = vsub.f32 %v1356, %v1593
        %v1612 = vsub.f32 %v1445, %v1594
        %v1613 = vsub.f32 %v1359, %v1593
        %v1614 = vsub.f32 %v1448, %v1594
        %v1615 = vsub.f32 %v1361, %v1593
        %v1616 = vsub.f32 %v1450, %v1594
        %v1617 = vsub.f32 %v1364, %v1593
        %v1618 = vsub.f32 %v1453, %v1594
        %v1619 = vsub.f32 %v1366, %v1593
        %v1620 = vsub.f32 %v1455, %v1594
        %v1621 = vsub.f32 %v1369, %v1593
        %v1622 = vsub.f32 %v1458, %v1594
        %v1623 = vsub.f32 %v1371, %v1593
        %v1624 = vsub.f32 %v1460, %v1594
        %v1625 = vsub.f32 %v1374, %v1593
        %v1626 = vsub.f32 %v1463, %v1594
        %v1627 = vsub.f32 %v1376, %v1593
        %v1628 = vsub.f32 %v1465, %v1594
        %v1629 = vsub.f32 %v1379, %v1593
        %v1630 = vsub.f32 %v1468, %v1594
        %v1631 = vsub.f32 %v1381, %v1593
        %v1632 = vsub.f32 %v1470, %v1594
        %v1633 = vsub.f32 %v1384, %v1593
        %v1634 = vsub.f32 %v1473, %v1594
        %v1635 = vsub.f32 %v1386, %v1593
        %v1636 = vsub.f32 %v1475, %v1594
        %v1637 = vsub.f32 %v1389, %v1593
        %v1638 = vsub.f32 %v1478, %v1594
        %v1639 = vsub.f32 %v1391, %v1593
        %v1640 = vsub.f32 %v1480, %v1594
        %v1641 = vsub.f32 %v1394, %v1593
        %v1642 = vsub.f32 %v1483, %v1594
        %v1643 = vsub.f32 %v1396, %v1593
        %v1644 = vsub.f32 %v1485, %v1594
        %v1645 = vsub.f32 %v1399, %v1593
        %v1646 = vsub.f32 %v1488, %v1594
        %v1647 = vsub.f32 %v1401, %v1593
        %v1648 = vsub.f32 %v1490, %v1594
        %v1649 = vsub.f32 %v1404, %v1593
        %v1650 = vsub.f32 %v1493, %v1594
        %v1651 = vsub.f32 %v1406, %v1593
        %v1652 = vsub.f32 %v1495, %v1594
        %v1653 = vsub.f32 %v1409, %v1593
        %v1654 = vsub.f32 %v1498, %v1594
        %v1655 = vsub.f32 %v1411, %v1593
        %v1656 = vsub.f32 %v1500, %v1594
        %v1657 = vsub.f32 %v1414, %v1593
        %v1658 = vsub.f32 %v1503, %v1594
        %v1659 = vsub.f32 %v1416, %v1593
        %v1660 = vsub.f32 %v1505, %v1594
        %v1661 = vmul.f32 %v1597, 1.442695
        %v1662 = vpow.pop %v1661
        %v1663 = vmul.f32 %v1598, 1.442695
        %v1664 = vpow.pop %v1663
        %v1665 = vmul.f32 %v1599, 1.442695
        %v1666 = vpow.pop %v1665
        %v1667 = vmul.f32 %v1600, 1.442695
        %v1668 = vpow.pop %v1667
        %v1669 = vmul.f32 %v1601, 1.442695
        %v1670 = vpow.pop %v1669
        %v1671 = vmul.f32 %v1602, 1.442695
        %v1672 = vpow.pop %v1671
        %v1673 = vmul.f32 %v1603, 1.442695
        %v1674 = vpow.pop %v1673
        %v1675 = vmul.f32 %v1604, 1.442695
        %v1676 = vpow.pop %v1675
        %v1677 = vmul.f32 %v1605, 1.442695
        %v1678 = vpow.pop %v1677
        %v1679 = vmul.f32 %v1606, 1.442695
        %v1680 = vpow.pop %v1679
        %v1681 = vmul.f32 %v1607, 1.442695
        %v1682 = vpow.pop %v1681
        %v1683 = vmul.f32 %v1608, 1.442695
        %v1684 = vpow.pop %v1683
        %v1685 = vmul.f32 %v1609, 1.442695
        %v1686 = vpow.pop %v1685
        %v1687 = vmul.f32 %v1610, 1.442695
        %v1688 = vpow.pop %v1687
        %v1689 = vmul.f32 %v1611, 1.442695
        %v1690 = vpow.pop %v1689
        %v1691 = vmul.f32 %v1612, 1.442695
        %v1692 = vpow.pop %v1691
        %v1693 = vmul.f32 %v1613, 1.442695
        %v1694 = vpow.pop %v1693
        %v1695 = vmul.f32 %v1614, 1.442695
        %v1696 = vpow.pop %v1695
        %v1697 = vmul.f32 %v1615, 1.442695
        %v1698 = vpow.pop %v1697
        %v1699 = vmul.f32 %v1616, 1.442695
        %v1700 = vpow.pop %v1699
        %v1701 = vmul.f32 %v1617, 1.442695
        %v1702 = vpow.pop %v1701
        %v1703 = vmul.f32 %v1618, 1.442695
        %v1704 = vpow.pop %v1703
        %v1705 = vmul.f32 %v1619, 1.442695
        %v1706 = vpow.pop %v1705
        %v1707 = vmul.f32 %v1620, 1.442695
        %v1708 = vpow.pop %v1707
        %v1709 = vmul.f32 %v1621, 1.442695
        %v1710 = vpow.pop %v1709
        %v1711 = vmul.f32 %v1622, 1.442695
        %v1712 = vpow.pop %v1711
        %v1713 = vmul.f32 %v1623, 1.442695
        %v1714 = vpow.pop %v1713
        %v1715 = vmul.f32 %v1624, 1.442695
        %v1716 = vpow.pop %v1715
        %v1717 = vmul.f32 %v1625, 1.442695
        %v1718 = vpow.pop %v1717
        %v1719 = vmul.f32 %v1626, 1.442695
        %v1720 = vpow.pop %v1719
        %v1721 = vmul.f32 %v1627, 1.442695
        %v1722 = vpow.pop %v1721
        %v1723 = vmul.f32 %v1628, 1.442695
        %v1724 = vpow.pop %v1723
        %v1725 = vmul.f32 %v1629, 1.442695
        %v1726 = vpow.pop %v1725
        %v1727 = vmul.f32 %v1630, 1.442695
        %v1728 = vpow.pop %v1727
        %v1729 = vmul.f32 %v1631, 1.442695
        %v1730 = vpow.pop %v1729
        %v1731 = vmul.f32 %v1632, 1.442695
        %v1732 = vpow.pop %v1731
        %v1733 = vmul.f32 %v1633, 1.442695
        %v1734 = vpow.pop %v1733
        %v1735 = vmul.f32 %v1634, 1.442695
        %v1736 = vpow.pop %v1735
        %v1737 = vmul.f32 %v1635, 1.442695
        %v1738 = vpow.pop %v1737
        %v1739 = vmul.f32 %v1636, 1.442695
        %v1740 = vpow.pop %v1739
        %v1741 = vmul.f32 %v1637, 1.442695
        %v1742 = vpow.pop %v1741
        %v1743 = vmul.f32 %v1638, 1.442695
        %v1744 = vpow.pop %v1743
        %v1745 = vmul.f32 %v1639, 1.442695
        %v1746 = vpow.pop %v1745
        %v1747 = vmul.f32 %v1640, 1.442695
        %v1748 = vpow.pop %v1747
        %v1749 = vmul.f32 %v1641, 1.442695
        %v1750 = vpow.pop %v1749
        %v1751 = vmul.f32 %v1642, 1.442695
        %v1752 = vpow.pop %v1751
        %v1753 = vmul.f32 %v1643, 1.442695
        %v1754 = vpow.pop %v1753
        %v1755 = vmul.f32 %v1644, 1.442695
        %v1756 = vpow.pop %v1755
        %v1757 = vmul.f32 %v1645, 1.442695
        %v1758 = vpow.pop %v1757
        %v1759 = vmul.f32 %v1646, 1.442695
        %v1760 = vpow.pop %v1759
        %v1761 = vmul.f32 %v1647, 1.442695
        %v1762 = vpow.pop %v1761
        %v1763 = vmul.f32 %v1648, 1.442695
        %v1764 = vpow.pop %v1763
        %v1765 = vmul.f32 %v1649, 1.442695
        %v1766 = vpow.pop %v1765
        %v1767 = vmul.f32 %v1650, 1.442695
        %v1768 = vpow.pop %v1767
        %v1769 = vmul.f32 %v1651, 1.442695
        %v1770 = vpow.pop %v1769
        %v1771 = vmul.f32 %v1652, 1.442695
        %v1772 = vpow.pop %v1771
        %v1773 = vmul.f32 %v1653, 1.442695
        %v1774 = vpow.pop %v1773
        %v1775 = vmul.f32 %v1654, 1.442695
        %v1776 = vpow.pop %v1775
        %v1777 = vmul.f32 %v1655, 1.442695
        %v1778 = vpow.pop %v1777
        %v1779 = vmul.f32 %v1656, 1.442695
        %v1780 = vpow.pop %v1779
        %v1781 = vmul.f32 %v1657, 1.442695
        %v1782 = vpow.pop %v1781
        %v1783 = vmul.f32 %v1658, 1.442695
        %v1784 = vpow.pop %v1783
        %v1785 = vmul.f32 %v1659, 1.442695
        %v1786 = vpow.pop %v1785
        %v1787 = vmul.f32 %v1660, 1.442695
        %v1788 = vpow.pop %v1787
        %v1789 = vld [vmem:[#allocation5] sm:$0x3]
        %v1790 = vmul.f32 %v1591, %v1789
        %v1791 = vadd.f32 %v1662, %v1666
        %v1792 = vadd.f32 %v1791, %v1670
        %v1793 = vadd.f32 %v1792, %v1674
        %v1794 = vadd.f32 %v1793, %v1678
        %v1795 = vadd.f32 %v1794, %v1682
        %v1796 = vadd.f32 %v1795, %v1686
        %v1797 = vadd.f32 %v1796, %v1690
        %v1798 = vadd.f32 %v1797, %v1694
        %v1799 = vadd.f32 %v1798, %v1698
        %v1800 = vadd.f32 %v1799, %v1702
        %v1801 = vadd.f32 %v1800, %v1706
        %v1802 = vadd.f32 %v1801, %v1710
        %v1803 = vadd.f32 %v1802, %v1714
        %v1804 = vadd.f32 %v1803, %v1718
        %v1805 = vadd.f32 %v1804, %v1722
        %v1806 = vadd.f32 %v1805, %v1726
        %v1807 = vadd.f32 %v1806, %v1730
        %v1808 = vadd.f32 %v1807, %v1734
        %v1809 = vadd.f32 %v1808, %v1738
        %v1810 = vadd.f32 %v1809, %v1742
        %v1811 = vadd.f32 %v1810, %v1746
        %v1812 = vadd.f32 %v1811, %v1750
        %v1813 = vadd.f32 %v1812, %v1754
        %v1814 = vadd.f32 %v1813, %v1758
        %v1815 = vadd.f32 %v1814, %v1762
        %v1816 = vadd.f32 %v1815, %v1766
        %v1817 = vadd.f32 %v1816, %v1770
        %v1818 = vadd.f32 %v1817, %v1774
        %v1819 = vadd.f32 %v1818, %v1778
        %v1820 = vadd.f32 %v1819, %v1782
        %v1821 = vadd.f32 %v1820, %v1786
        %v1822 = vrot.slane %v1821, 4
        %v1823 = vadd.f32 %v1821, %v1822
        %v1824 = vrot.slane %v1823, 2
        %v1825 = vadd.f32 %v1823, %v1824
        %v1826 = vrot.slane %v1825, 1
        %v1827 = vadd.f32 %v1825, %v1826
        %v1828 = vadd.f32 %v1664, %v1668
        %v1829 = vadd.f32 %v1828, %v1672
        %v1830 = vadd.f32 %v1829, %v1676
        %v1831 = vadd.f32 %v1830, %v1680
        %v1832 = vadd.f32 %v1831, %v1684
        %v1833 = vadd.f32 %v1832, %v1688
        %v1834 = vadd.f32 %v1833, %v1692
        %v1835 = vadd.f32 %v1834, %v1696
        %v1836 = vadd.f32 %v1835, %v1700
        %v1837 = vadd.f32 %v1836, %v1704
        %v1838 = vadd.f32 %v1837, %v1708
        %v1839 = vadd.f32 %v1838, %v1712
        %v1840 = vadd.f32 %v1839, %v1716
        %v1841 = vadd.f32 %v1840, %v1720
        %v1842 = vadd.f32 %v1841, %v1724
        %v1843 = vadd.f32 %v1842, %v1728
        %v1844 = vadd.f32 %v1843, %v1732
        %v1845 = vadd.f32 %v1844, %v1736
        %v1846 = vadd.f32 %v1845, %v1740
        %v1847 = vadd.f32 %v1846, %v1744
        %v1848 = vadd.f32 %v1847, %v1748
        %v1849 = vadd.f32 %v1848, %v1752
        %v1850 = vadd.f32 %v1849, %v1756
        %v1851 = vadd.f32 %v1850, %v1760
        %v1852 = vadd.f32 %v1851, %v1764
        %v1853 = vadd.f32 %v1852, %v1768
        %v1854 = vadd.f32 %v1853, %v1772
        %v1855 = vadd.f32 %v1854, %v1776
        %v1856 = vadd.f32 %v1855, %v1780
        %v1857 = vadd.f32 %v1856, %v1784
        %v1858 = vadd.f32 %v1857, %v1788
        %v1859 = vrot.slane %v1858, 4
        %v1860 = vadd.f32 %v1858, %v1859
        %v1861 = vrot.slane %v1860, 2
        %v1862 = vadd.f32 %v1860, %v1861
        %v1863 = vrot.slane %v1862, 1
        %v1864 = vadd.f32 %v1862, %v1863
        %v1867 = vrot.slane %v1864, 7
        %v1868 = vsel %vm1585, %v1827, %v1867
        %v1870 = vadd.f32 %v1790, %v1868
        %v1871 = vlaneseq
        %vm1872 = vcmp.ge.s32.totalorder %v1871, 0
        %vm1873 = vcmp.lt.s32.totalorder %v1871, 256
        %vm1874 = vmand %vm1872, %vm1873
        %1875 = vst.msk [vmem:[#allocation5] sm:$0x3] %vm1874, %v1870
        %v1876 = vld [vmem:[#allocation6] sm:$0xff]
        %v1877 = vld [vmem:[#allocation6 + $0x8] sm:$0xff]
        %v1878 = vld [vmem:[#allocation6 + $0x10] sm:$0xff]
        %v1879 = vld [vmem:[#allocation6 + $0x18] sm:$0xff]
        %v1880 = vld [vmem:[#allocation6 + $0x20] sm:$0xff]
        %v1881 = vld [vmem:[#allocation6 + $0x28] sm:$0xff]
        %v1882 = vld [vmem:[#allocation6 + $0x30] sm:$0xff]
        %v1883 = vld [vmem:[#allocation6 + $0x38] sm:$0xff]
        %v1885 = vperm.slane %v1591, 0
        %v1886 = vperm.slane %v1591, 1
        %v1889 = vmul.f32 %v1885, %v1876
        %v1890 = vmul.f32 %v1886, %v1877
        %v1891 = vmul.f32 %v1885, %v1878
        %v1892 = vmul.f32 %v1886, %v1879
        %v1893 = vmul.f32 %v1885, %v1880
        %v1894 = vmul.f32 %v1886, %v1881
        %v1895 = vmul.f32 %v1885, %v1882
        %v1896 = vmul.f32 %v1886, %v1883
        %v1897 = vpack.c.bf16 %v993, %v991
        %v1898 = vpack.c.bf16 %v1012, %v1010
        %v1899 = vpack.c.bf16 %v998, %v996
        %v1900 = vpack.c.bf16 %v1017, %v1015
        %v1901 = vpack.c.bf16 %v1666, %v1662
        %v1902 = vpack.c.bf16 %v1668, %v1664
        %v1903 = vpack.c.bf16 %v1674, %v1670
        %v1904 = vpack.c.bf16 %v1676, %v1672
        %v1905 = vpack.c.bf16 %v1682, %v1678
        %v1906 = vpack.c.bf16 %v1684, %v1680
        %v1907 = vpack.c.bf16 %v1690, %v1686
        %v1908 = vpack.c.bf16 %v1692, %v1688
        %v1909 = vpack.c.bf16 %v1698, %v1694
        %v1910 = vpack.c.bf16 %v1700, %v1696
        %v1911 = vpack.c.bf16 %v1706, %v1702
        %v1912 = vpack.c.bf16 %v1708, %v1704
        %v1913 = vpack.c.bf16 %v1714, %v1710
        %v1914 = vpack.c.bf16 %v1716, %v1712
        %v1915 = vpack.c.bf16 %v1722, %v1718
        %v1916 = vpack.c.bf16 %v1724, %v1720
        %v1917 = vpack.c.bf16 %v1730, %v1726
        %v1918 = vpack.c.bf16 %v1732, %v1728
        %v1919 = vpack.c.bf16 %v1738, %v1734
        %v1920 = vpack.c.bf16 %v1740, %v1736
        %v1921 = vpack.c.bf16 %v1746, %v1742
        %v1922 = vpack.c.bf16 %v1748, %v1744
        %v1923 = vpack.c.bf16 %v1754, %v1750
        %v1924 = vpack.c.bf16 %v1756, %v1752
        %v1925 = vpack.c.bf16 %v1762, %v1758
        %v1926 = vpack.c.bf16 %v1764, %v1760
        %v1927 = vpack.c.bf16 %v1770, %v1766
        %v1928 = vpack.c.bf16 %v1772, %v1768
        %v1929 = vpack.c.bf16 %v1778, %v1774
        %v1930 = vpack.c.bf16 %v1780, %v1776
        %v1931 = vpack.c.bf16 %v1786, %v1782
        %v1932 = vpack.c.bf16 %v1788, %v1784
        %1933 = vmatpush.bf16.msra.mxu0 %v1915
        %1934 = vmatpush.bf16.msra.mxu0 %v1913
        %1935 = vmatpush.bf16.msra.mxu0 %v1911
        %1936 = vmatpush.bf16.msra.mxu0 %v1909
        %1937 = vmatpush.bf16.msra.mxu0 %v1907
        %1938 = vmatpush.bf16.msra.mxu0 %v1905
        %1939 = vmatpush.bf16.msra.mxu0 %v1903
        %1940 = vmatpush.bf16.msra.mxu0 %v1901
        %1941 = vmatmul.bf16.gmra.mxu0 %v1897
        %v1942 = vpop.f32.mrf.mxu0
        %v1943 = vadd.f32 0.0, %v1942
        %v1944 = vpop.f32.mrf.mxu0
        %v1945 = vadd.f32 0.0, %v1944
        %1946 = vmatmul.bf16.gmra.mxu0 %v1899
        %v1947 = vpop.f32.mrf.mxu0
        %v1948 = vadd.f32 0.0, %v1947
        %v1949 = vpop.f32.mrf.mxu0
        %v1950 = vadd.f32 0.0, %v1949
        %1951 = vdwg.mxu0
        %1952 = vmatpush.bf16.msra.mxu0 %v1931
        %1953 = vmatpush.bf16.msra.mxu0 %v1929
        %1954 = vmatpush.bf16.msra.mxu0 %v1927
        %1955 = vmatpush.bf16.msra.mxu0 %v1925
        %1956 = vmatpush.bf16.msra.mxu0 %v1923
        %1957 = vmatpush.bf16.msra.mxu0 %v1921
        %1958 = vmatpush.bf16.msra.mxu0 %v1919
        %1959 = vmatpush.bf16.msra.mxu0 %v1917
        %1960 = vmatmul.bf16.gmra.mxu0 %v1898
        %v1961 = vpop.f32.mrf.mxu0
        %v1962 = vadd.f32 %v1943, %v1961
        %v1963 = vpop.f32.mrf.mxu0
        %v1964 = vadd.f32 %v1945, %v1963
        %1965 = vmatmul.bf16.gmra.mxu0 %v1900
        %v1966 = vpop.f32.mrf.mxu0
        %v1967 = vadd.f32 %v1948, %v1966
        %v1968 = vpop.f32.mrf.mxu0
        %v1969 = vadd.f32 %v1950, %v1968
        %1970 = vdwg.mxu0
        %1971 = vmatpush.bf16.msra.mxu0 %v1916
        %1972 = vmatpush.bf16.msra.mxu0 %v1914
        %1973 = vmatpush.bf16.msra.mxu0 %v1912
        %1974 = vmatpush.bf16.msra.mxu0 %v1910
        %1975 = vmatpush.bf16.msra.mxu0 %v1908
        %1976 = vmatpush.bf16.msra.mxu0 %v1906
        %1977 = vmatpush.bf16.msra.mxu0 %v1904
        %1978 = vmatpush.bf16.msra.mxu0 %v1902
        %1979 = vmatmul.bf16.gmra.mxu0 %v1897
        %v1980 = vpop.f32.mrf.mxu0
        %v1981 = vadd.f32 0.0, %v1980
        %v1982 = vpop.f32.mrf.mxu0
        %v1983 = vadd.f32 0.0, %v1982
        %1984 = vmatmul.bf16.gmra.mxu0 %v1899
        %v1985 = vpop.f32.mrf.mxu0
        %v1986 = vadd.f32 0.0, %v1985
        %v1987 = vpop.f32.mrf.mxu0
        %v1988 = vadd.f32 0.0, %v1987
        %1989 = vdwg.mxu0
        %1990 = vmatpush.bf16.msra.mxu0 %v1932
        %1991 = vmatpush.bf16.msra.mxu0 %v1930
        %1992 = vmatpush.bf16.msra.mxu0 %v1928
        %1993 = vmatpush.bf16.msra.mxu0 %v1926
        %1994 = vmatpush.bf16.msra.mxu0 %v1924
        %1995 = vmatpush.bf16.msra.mxu0 %v1922
        %1996 = vmatpush.bf16.msra.mxu0 %v1920
        %1997 = vmatpush.bf16.msra.mxu0 %v1918
        %1998 = vmatmul.bf16.gmra.mxu0 %v1898
        %v1999 = vpop.f32.mrf.mxu0
        %v2000 = vadd.f32 %v1981, %v1999
        %v2001 = vpop.f32.mrf.mxu0
        %v2002 = vadd.f32 %v1983, %v2001
        %2003 = vmatmul.bf16.gmra.mxu0 %v1900
        %v2004 = vpop.f32.mrf.mxu0
        %v2005 = vadd.f32 %v1986, %v2004
        %v2006 = vpop.f32.mrf.mxu0
        %v2007 = vadd.f32 %v1988, %v2006
        %2008 = vdwg.mxu0
        %v2009 = vadd.f32 %v1889, %v1962
        %v2010 = vadd.f32 %v1890, %v2000
        %v2011 = vadd.f32 %v1891, %v1964
        %v2012 = vadd.f32 %v1892, %v2002
        %v2013 = vadd.f32 %v1893, %v1967
        %v2014 = vadd.f32 %v1894, %v2005
        %v2015 = vadd.f32 %v1895, %v1969
        %v2016 = vadd.f32 %v1896, %v2007
        %2017 = vst [vmem:[#allocation6] sm:$0xff] %v2009
        %2018 = vst [vmem:[#allocation6 + $0x8] sm:$0xff] %v2010
        %2019 = vst [vmem:[#allocation6 + $0x10] sm:$0xff] %v2011
        %2020 = vst [vmem:[#allocation6 + $0x18] sm:$0xff] %v2012
        %2021 = vst [vmem:[#allocation6 + $0x20] sm:$0xff] %v2013
        %2022 = vst [vmem:[#allocation6 + $0x28] sm:$0xff] %v2014
        %2023 = vst [vmem:[#allocation6 + $0x30] sm:$0xff] %v2015
        %2024 = vst [vmem:[#allocation6 + $0x38] sm:$0xff] %v2016
        %2025 = vst.msk [vmem:[#allocation4] sm:$0x3] %vm1874, %v1588
        %p2026 = scmp.eq.s32.totalorder %s32, 1
        // Predicated region
        $region65: #{tpu_custom_call.1} parent=55 // pred_check
          %p2027 = pneg %p2026
        $region66: #{tpu_custom_call.1} parent=55 // pred_check_branch
          %2029 = sbr.rel (%p2027) target = $region68
        $region67: #{tpu_custom_call.1} parent=55 // pred_region
          %v2030 = vld [vmem:[#allocation6] sm:$0xff]
          %v2031 = vld [vmem:[#allocation6 + $0x8] sm:$0xff]
          %v2032 = vld [vmem:[#allocation6 + $0x10] sm:$0xff]
          %v2033 = vld [vmem:[#allocation6 + $0x18] sm:$0xff]
          %v2034 = vld [vmem:[#allocation6 + $0x20] sm:$0xff]
          %v2035 = vld [vmem:[#allocation6 + $0x28] sm:$0xff]
          %v2036 = vld [vmem:[#allocation6 + $0x30] sm:$0xff]
          %v2037 = vld [vmem:[#allocation6 + $0x38] sm:$0xff]
          %v2038 = vld [vmem:[#allocation5] sm:$0x3]
          %v2039 = vrcp.pop %v2038
          %v2041 = vperm.slane %v2039, 0
          %v2042 = vperm.slane %v2039, 1
          %v2045 = vmul.f32 %v2030, %v2041
          %v2046 = vmul.f32 %v2031, %v2042
          %v2047 = vmul.f32 %v2032, %v2041
          %v2048 = vmul.f32 %v2033, %v2042
          %v2049 = vmul.f32 %v2034, %v2041
          %v2050 = vmul.f32 %v2035, %v2042
          %v2051 = vmul.f32 %v2036, %v2041
          %v2052 = vmul.f32 %v2037, %v2042
          %v2053 = vld [vmem:[%s474] sm:$0xff]
          %v2054 = vld [vmem:[%s474 + $0x8] sm:$0xff]
          %v2055 = vld [vmem:[%s512] sm:$0xf]
          %v2056 = vpack.c.bf16 %v2047, %v2045
          %v2057 = vpack.c.bf16 %v2048, %v2046
          %v2058 = vpack.c.bf16 %v2051, %v2049
          %v2059 = vpack.c.bf16 %v2052, %v2050
          %v2061 = vsel %vm1280, %v2055, 0
          %2063 = vmatpush.bf16.msra.mxu0 0
          %2064 = vmatpush.bf16.msra.mxu0 0
          %2065 = vmatpush.bf16.msra.mxu0 0
          %2066 = vmatpush.bf16.msra.mxu0 0
          %2067 = vmatpush.bf16.msra.mxu0 0
          %2068 = vmatpush.bf16.msra.mxu0 0
          %2069 = vmatpush.bf16.msra.mxu0 %v2058
          %2070 = vmatpush.bf16.msra.mxu0 %v2056
          %2071 = vmatmul.bf16.gmra.mxu0 %v2061
          %v2072 = vpop.f32.mrf.mxu0
          %v2073 = vadd.f32 0.0, %v2072
          %v2074 = vpop.f32.mrf.mxu0
          %2075 = vdwg.mxu0
          %2076 = vmatpush.bf16.msra.mxu0 0
          %2077 = vmatpush.bf16.msra.mxu0 0
          %2078 = vmatpush.bf16.msra.mxu0 0
          %2079 = vmatpush.bf16.msra.mxu0 0
          %2080 = vmatpush.bf16.msra.mxu0 0
          %2081 = vmatpush.bf16.msra.mxu0 0
          %2082 = vmatpush.bf16.msra.mxu0 %v2059
          %2083 = vmatpush.bf16.msra.mxu0 %v2057
          %2084 = vmatmul.bf16.gmra.mxu0 %v2061
          %v2085 = vpop.f32.mrf.mxu0
          %v2086 = vadd.f32 0.0, %v2085
          %v2087 = vpop.f32.mrf.mxu0
          %2088 = vdwg.mxu0
          %v2089 = vadd.f32 %v2053, %v2073
          %v2090 = vadd.f32 %v2054, %v2086
          %2091 = vst [vmem:[%s474] sm:$0xff] %v2089
          %2092 = vst [vmem:[%s474 + $0x8] sm:$0xff] %v2090
        $region68: #{tpu_custom_call.1} parent=55 // pred_fallthru
          _
        %s2093 = sand.u32 %s292, 1
        %s2094 = scalar_lea.sflag [#allocation8], %s2093
        %s2095 = sand.u32 %s292, 1
        %s2096 = smul.addr %s2095, 16
        %s2097 = scalar_lea.vmem [#allocation7], %s2096
        // Predicated region
        $region69: #{tpu_custom_call.1} parent=55 // pred_check
          %p2098 = pneg %p302
        $region70: #{tpu_custom_call.1} parent=55 // pred_check_branch
          %2100 = sbr.rel (%p2098) target = $region72
        $region71: #{tpu_custom_call.1} parent=55 // pred_region
          %s2101 = smul.u32 2, %s30
          %2103 = vsyncadd %s2094, 0
          %s2104 = smul.addr %s29, 4
          %s2105 = sadd.s32 %s2101, %s2104
          %s2106 = smul.addr %s2105, 8
          %s2107 = scalar_lea.hbm %s9, %s2106
          %s2109 = sshll.u32 %s2097, 4
          %s2110 = int_to_ptr.vmem [resolvable:$true] %s2109
          %s2111 = sshll.u32 %s2107, 4
          %s2112 = int_to_ptr.hbm [resolvable:$true] %s2111
          %2114 = dma.vmem_to_hbm [thread:$0]  %s2110, 256, %s2112, %s2094
        $region72: #{tpu_custom_call.1} parent=55 // pred_fallthru
          _
      $region56: #{tpu_custom_call.1} parent=5 // pred_fallthru
        _
      %p2115 = scmp.le.s32.totalorder 2, %s18
      // Predicated region
      $region73: #{tpu_custom_call.1} parent=5 // pred_check
        %p2116 = pneg %p2115
      $region74: #{tpu_custom_call.1} parent=5 // pred_check_branch
        %2118 = sbr.rel (%p2116) target = $region76
      $region75: #{tpu_custom_call.1} parent=5 // pred_region
        %s2119 = ssub.s32 %s18, 2
        // Predicated region
        $region77: #{tpu_custom_call.1} parent=75 // pred_check
          %p2120 = pneg %p308
        $region78: #{tpu_custom_call.1} parent=75 // pred_check_branch
          %2122 = sbr.rel (%p2120) target = $region80
        $region79: #{tpu_custom_call.1} parent=75 // pred_region
          %s2123 = sand.u32 %s293, 1
          %s2124 = scalar_lea.sflag [#allocation8], %s2123
          %s2125 = sand.u32 %s293, 1
          %s2126 = smul.addr %s2125, 16
          %s2127 = scalar_lea.vmem [#allocation7], %s2126
          %2129 = dma.done %s2124, 256
        $region80: #{tpu_custom_call.1} parent=75 // pred_fallthru
          _
      $region76: #{tpu_custom_call.1} parent=5 // pred_fallthru
        _
    $region6: #{tpu_custom_call.1} parent=1 // loop_footer
      %s22 = sadd.s32 1, %s18
    $region7: #{tpu_custom_call.1} parent=1 // loop_footer_branch
      %17 = sbr.rel target = $region3
    $region8: #{tpu_custom_call.1} parent=1 // loop_exit
      _
    %2130 = vsyncpa [#allocation8], 1
    %s2131 = scalar_lea.sflag [#allocation8], 1
    %2132 = vsyncpa %s2131, 1

</llo_original>
